<compile_context>
chip_gen: v7x
topology: tpu7x:2x2x1
jax: 0.10.0
libtpu: 0.0.40
codegen_flags: <defaults>
</compile_context>

<pallas_src>
import math

import jax
import jax.numpy as jnp
import numpy as np
from jax import lax
from jax.experimental import pallas as pl
from jax.experimental.pallas import tpu as pltpu

# ----------------------------- model config ---------------------------------
B = 2        # batch
S = 8        # sequence length
D = 32       # d_model
H = 4        # heads
DK = D // H  # d_k
DFF = 64     # feed-forward hidden
EPS = 1e-6
# TODO(synk): dropout (p=0.2) has no deterministic forward semantics; modeled
#             as identity (module in eval mode).


def _recip(x):
    """approx EUP reciprocal + one Newton-Raphson step (rel err ~1e-7)."""
    r = pl.reciprocal(x, approx=True)
    return r * (2.0 - x * r)


def _layer_norm_kernel(v, gamma, beta):
    """PyTorch LayerNorm from the reference module: unbiased std, (std + eps)."""
    mean = jnp.mean(v, axis=-1, keepdims=True)
    var = jnp.sum((v - mean) ** 2, axis=-1, keepdims=True) * (1.0 / (v.shape[-1] - 1))
    inv = _recip(jnp.sqrt(var) + EPS)
    return gamma * (v - mean) * inv + beta


def encoder_layer_kernel(
    x_ref, amask_ref,
    ln1_g_ref, ln1_b_ref,
    wqkv_ref, bqkv_ref, wo_ref, bo_ref,
    ln2_g_ref, ln2_b_ref,
    w1_ref, b1_ref, w2_ref, b2_ref,
    o_ref,
    attn_sc,                         # (B*S, D) f32 VMEM scratch: per-head outputs
):
    x = x_ref[...]                   # (B*S, D), all batch rows flattened
    amask = amask_ref[...]           # (H, S, S), additive mask (0 or -1e9)

    # ---- sublayer 0: multi-head self-attention on LN(x) ----
    xn = _layer_norm_kernel(x, ln1_g_ref[...], ln1_b_ref[...])          # (B*S, D)

    # fused QKV projection: one MXU push, lane width 3*D.
    # The 1/sqrt(d_k) scale is already folded into the Q columns (wrapper).
    qkv = (jnp.dot(xn, wqkv_ref[...], preferred_element_type=jnp.float32)
           + bqkv_ref[...])                                             # (B*S, 3D)

    # NT contraction (no explicit K transpose): contract last dim of q and k.
    nt_dims = (((1,), (1,)), ((), ()))

    for b in range(B):                       # static, tiny loops (B*H = 8)
        rlo, rhi = b * S, (b + 1) * S
        q_b = qkv[rlo:rhi, 0 * D:1 * D]                                 # (S, D)
        k_b = qkv[rlo:rhi, 1 * D:2 * D]                                 # (S, D)
        v_b = qkv[rlo:rhi, 2 * D:3 * D]                                 # (S, D)
        for h in range(H):
            clo, chi = h * DK, (h + 1) * DK
            qh = q_b[:, clo:chi]                                        # (S, DK)
            kh = k_b[:, clo:chi]                                        # (S, DK)
            vh = v_b[:, clo:chi]                                        # (S, DK)

            s = lax.dot_general(qh, kh, dimension_numbers=nt_dims,
                                preferred_element_type=jnp.float32)     # (S, S)
            s = s + amask[h]
            m = jnp.max(s, axis=-1, keepdims=True)
            p = jnp.exp(s - m)
            p = p * _recip(jnp.sum(p, axis=-1, keepdims=True))

            # write head output at its static (row, lane) offset; Wo applied
            # once over the full (B*S, D) block after both loops.
            attn_sc[rlo:rhi, clo:chi] = jnp.dot(
                p, vh, preferred_element_type=jnp.float32)              # (S, DK)

    attn_out = (jnp.dot(attn_sc[...], wo_ref[...],
                        preferred_element_type=jnp.float32)
                + bo_ref[...])                                          # (B*S, D)
    x1 = x + attn_out                                                   # residual 1

    # ---- sublayer 1: position-wise feed-forward on LN(x1) ----
    x1n = _layer_norm_kernel(x1, ln2_g_ref[...], ln2_b_ref[...])
    hdn = jnp.maximum(
        jnp.dot(x1n, w1_ref[...], preferred_element_type=jnp.float32) + b1_ref[...],
        0.0)                                                            # (B*S, DFF)
    ffo = jnp.dot(hdn, w2_ref[...], preferred_element_type=jnp.float32) + b2_ref[...]

    o_ref[...] = x1 + ffo                                               # residual 2


def encoder_layer(x, mask, params):
    """x: (B, S, D) f32; mask: (H, S, S) f32 (0 = masked position)."""
    (ln1_g, ln1_b, wq, bq, wk, bk, wv, bv, wo, bo,
     ln2_g, ln2_b, w1, b1, w2, b2) = params

    # wrapper-side packing (done once): flatten rows, fuse QKV, fold the
    # softmax scale into the Q weight/bias, build the additive mask.
    scale = 1.0 / math.sqrt(DK)
    xf = x.reshape(B * S, D)
    amask = jnp.where(mask == 0, -1.0e9, 0.0).astype(jnp.float32)       # (H, S, S)
    wqkv = jnp.concatenate([wq * scale, wk, wv], axis=1)                # (D, 3D)
    bqkv = jnp.concatenate([bq * scale, bk, bv], axis=1)                # (1, 3D)

    vmem = pl.BlockSpec(memory_space=pltpu.MemorySpace.VMEM)

    out = pl.pallas_call(
        encoder_layer_kernel,
        out_shape=jax.ShapeDtypeStruct((B * S, D), jnp.float32),
        in_specs=[vmem] * 14,
        out_specs=vmem,
        scratch_shapes=[pltpu.VMEM((B * S, D), jnp.float32)],
    )(xf, amask, ln1_g, ln1_b, wqkv, bqkv, wo, bo,
      ln2_g, ln2_b, w1, b1, w2, b2)

    return out.reshape(B, S, D)


# -------------------------- plain-JAX reference ------------------------------
def _layer_norm_ref(v, gamma, beta):
    mean = jnp.mean(v, axis=-1, keepdims=True)
    var = jnp.sum((v - mean) ** 2, axis=-1, keepdims=True) / (v.shape[-1] - 1)
    std = jnp.sqrt(var)
    return gamma * (v - mean) / (std + EPS) + beta


def encoder_layer_ref(x, mask, params):
    (ln1_g, ln1_b, wq, bq, wk, bk, wv, bv, wo, bo,
     ln2_g, ln2_b, w1, b1, w2, b2) = params
    xn = _layer_norm_ref(x, ln1_g, ln1_b)
    q = xn @ wq + bq
    k = xn @ wk + bk
    v = xn @ wv + bv
    rs = lambda t: t.reshape(B, S, H, DK).transpose(0, 2, 1, 3)
    qh, kh, vh = rs(q), rs(k), rs(v)
    scores = jnp.einsum("bhqd,bhkd->bhqk", qh, kh) / math.sqrt(DK)
    scores = jnp.where(mask[None] == 0, -1.0e9, scores)                 # masked_fill
    p = jax.nn.softmax(scores, axis=-1)
    o = jnp.einsum("bhqk,bhkd->bhqd", p, vh).transpose(0, 2, 1, 3).reshape(B, S, D)
    x1 = x + (o @ wo + bo)
    x1n = _layer_norm_ref(x1, ln2_g, ln2_b)
    ff = jnp.maximum(x1n @ w1 + b1, 0.0) @ w2 + b2
    return x1 + ff


# ------------------------------- main ----------------------------------------
if __name__ == "__main__":
    key = jax.random.PRNGKey(0)
    ks = jax.random.split(key, 12)

    x = jax.random.normal(ks[0], (B, S, D), dtype=jnp.float32)
    # mask: (H, S, S) with some masked (0) positions; keep the diagonal
    # unmasked so no row is fully masked.
    mask = (jax.random.uniform(ks[1], (H, S, S)) > 0.2).astype(jnp.float32)
    mask = jnp.maximum(mask, jnp.eye(S, dtype=jnp.float32)[None])

    def lin(k, fan_in, fan_out):
        w = jax.random.normal(k, (fan_in, fan_out), jnp.float32) / math.sqrt(fan_in)
        b = jnp.zeros((1, fan_out), jnp.float32)
        return w, b

    wq, bq = lin(ks[2], D, D)
    wk, bk = lin(ks[3], D, D)
    wv, bv = lin(ks[4], D, D)
    wo, bo = lin(ks[5], D, D)
    w1, b1 = lin(ks[6], D, DFF)
    w2, b2 = lin(ks[7], DFF, D)
    # non-zero biases so the test is non-trivial
    bq = jax.random.normal(ks[8], (1, D), jnp.float32) * 0.1
    bo = jax.random.normal(ks[9], (1, D), jnp.float32) * 0.1
    b1 = jax.random.normal(ks[10], (1, DFF), jnp.float32) * 0.1
    b2 = jax.random.normal(ks[11], (1, D), jnp.float32) * 0.1

    ln1_g = jnp.ones((1, D), jnp.float32)
    ln1_b = jnp.zeros((1, D), jnp.float32)
    ln2_g = jnp.ones((1, D), jnp.float32)
    ln2_b = jnp.zeros((1, D), jnp.float32)

    params = (ln1_g, ln1_b, wq, bq, wk, bk, wv, bv, wo, bo,
              ln2_g, ln2_b, w1, b1, w2, b2)

    out = encoder_layer(x, mask, params)
    out = jax.block_until_ready(out)

    ref = encoder_layer_ref(x, mask, params)
    np.testing.assert_allclose(np.asarray(out), np.asarray(ref),
                               rtol=1e-4, atol=1e-4)
    print("KERNEL_OK")
</pallas_src>

<mosaic_0001>
module attributes {stable_mosaic.version = 11 : i64} {
  func.func @encoder_layer_kernel(%arg0: memref<16x32xf32, #tpu.memory_space<vmem>>, %arg1: memref<4x8x8xf32, #tpu.memory_space<vmem>>, %arg2: memref<1x32xf32, #tpu.memory_space<vmem>>, %arg3: memref<1x32xf32, #tpu.memory_space<vmem>>, %arg4: memref<32x96xf32, #tpu.memory_space<vmem>>, %arg5: memref<1x96xf32, #tpu.memory_space<vmem>>, %arg6: memref<32x32xf32, #tpu.memory_space<vmem>>, %arg7: memref<1x32xf32, #tpu.memory_space<vmem>>, %arg8: memref<1x32xf32, #tpu.memory_space<vmem>>, %arg9: memref<1x32xf32, #tpu.memory_space<vmem>>, %arg10: memref<32x64xf32, #tpu.memory_space<vmem>>, %arg11: memref<1x64xf32, #tpu.memory_space<vmem>>, %arg12: memref<64x32xf32, #tpu.memory_space<vmem>>, %arg13: memref<1x32xf32, #tpu.memory_space<vmem>>, %arg14: memref<16x32xf32, #tpu.memory_space<vmem>>, %arg15: memref<16x32xf32, #tpu.memory_space<vmem>>) attributes {dimension_semantics = [], scalar_prefetch = 0 : i64, scratch_operands = 1 : i64, tpu.core_type = #tpu.core_type<tc>} {
    %c0 = arith.constant 0 : index
    %c0_0 = arith.constant 0 : index
    %0 = vector.load %arg0[%c0, %c0_0] : memref<16x32xf32, #tpu.memory_space<vmem>>, vector<16x32xf32>
    %c0_1 = arith.constant 0 : index
    %c0_2 = arith.constant 0 : index
    %c0_3 = arith.constant 0 : index
    %1 = vector.load %arg1[%c0_1, %c0_2, %c0_3] : memref<4x8x8xf32, #tpu.memory_space<vmem>>, vector<4x8x8xf32>
    %c0_4 = arith.constant 0 : index
    %c0_5 = arith.constant 0 : index
    %2 = vector.load %arg2[%c0_4, %c0_5] : memref<1x32xf32, #tpu.memory_space<vmem>>, vector<1x32xf32>
    %c0_6 = arith.constant 0 : index
    %c0_7 = arith.constant 0 : index
    %3 = vector.load %arg3[%c0_6, %c0_7] : memref<1x32xf32, #tpu.memory_space<vmem>>, vector<1x32xf32>
    %cst = arith.constant dense<0.000000e+00> : vector<16xf32>
    %4 = vector.multi_reduction <add>, %0, %cst [1] : vector<16x32xf32> to vector<16xf32>
    %5 = vector.shape_cast %4 : vector<16xf32> to vector<16x1xf32>
    %cst_8 = arith.constant 3.200000e+01 : f32
    %6 = vector.broadcast %cst_8 : f32 to vector<16x1xf32>
    %7 = arith.divf %5, %6 : vector<16x1xf32>
    %8 = vector.broadcast %7 : vector<16x1xf32> to vector<16x32xf32>
    %9 = arith.subf %0, %8 : vector<16x32xf32>
    %10 = arith.mulf %9, %9 : vector<16x32xf32>
    %cst_9 = arith.constant dense<0.000000e+00> : vector<16xf32>
    %11 = vector.multi_reduction <add>, %10, %cst_9 [1] : vector<16x32xf32> to vector<16xf32>
    %12 = vector.shape_cast %11 : vector<16xf32> to vector<16x1xf32>
    %cst_10 = arith.constant 0.0322580636 : f32
    %13 = vector.broadcast %cst_10 : f32 to vector<16x1xf32>
    %14 = arith.mulf %12, %13 : vector<16x1xf32>
    %15 = math.sqrt %14 : vector<16x1xf32>
    %cst_11 = arith.constant 9.99999997E-7 : f32
    %16 = vector.broadcast %cst_11 : f32 to vector<16x1xf32>
    %17 = arith.addf %15, %16 : vector<16x1xf32>
    %18 = tpu.reciprocal %17 {approx = true} : vector<16x1xf32> -> vector<16x1xf32>
    %19 = arith.mulf %17, %18 : vector<16x1xf32>
    %cst_12 = arith.constant 2.000000e+00 : f32
    %20 = vector.broadcast %cst_12 : f32 to vector<16x1xf32>
    %21 = arith.subf %20, %19 : vector<16x1xf32>
    %22 = arith.mulf %18, %21 : vector<16x1xf32>
    %23 = vector.broadcast %7 : vector<16x1xf32> to vector<16x32xf32>
    %24 = arith.subf %0, %23 : vector<16x32xf32>
    %25 = vector.broadcast %2 : vector<1x32xf32> to vector<16x32xf32>
    %26 = arith.mulf %25, %24 : vector<16x32xf32>
    %27 = vector.broadcast %22 : vector<16x1xf32> to vector<16x32xf32>
    %28 = arith.mulf %26, %27 : vector<16x32xf32>
    %29 = vector.broadcast %3 : vector<1x32xf32> to vector<16x32xf32>
    %30 = arith.addf %28, %29 : vector<16x32xf32>
    %c0_13 = arith.constant 0 : index
    %c0_14 = arith.constant 0 : index
    %31 = vector.load %arg4[%c0_13, %c0_14] : memref<32x96xf32, #tpu.memory_space<vmem>>, vector<32x96xf32>
    %cst_15 = arith.constant dense<0.000000e+00> : vector<16x96xf32>
    %32 = tpu.matmul %30, %31, %cst_15 {dimension_numbers = #tpu.dot_dimension_numbers<[1], [0], [0], [1], [0, 0, 1, 1], [], []>} : vector<16x32xf32>, vector<32x96xf32>, vector<16x96xf32> -> vector<16x96xf32>
    %c0_16 = arith.constant 0 : index
    %c0_17 = arith.constant 0 : index
    %33 = vector.load %arg5[%c0_16, %c0_17] : memref<1x96xf32, #tpu.memory_space<vmem>>, vector<1x96xf32>
    %34 = vector.broadcast %33 : vector<1x96xf32> to vector<16x96xf32>
    %35 = arith.addf %32, %34 : vector<16x96xf32>
    %36 = vector.extract_strided_slice %35 {offsets = [0, 0], sizes = [8, 32], strides = [1, 1]} : vector<16x96xf32> to vector<8x32xf32>
    %37 = vector.extract_strided_slice %35 {offsets = [0, 32], sizes = [8, 32], strides = [1, 1]} : vector<16x96xf32> to vector<8x32xf32>
    %38 = vector.extract_strided_slice %35 {offsets = [0, 64], sizes = [8, 32], strides = [1, 1]} : vector<16x96xf32> to vector<8x32xf32>
    %39 = vector.extract_strided_slice %36 {offsets = [0, 0], sizes = [8, 8], strides = [1, 1]} : vector<8x32xf32> to vector<8x8xf32>
    %40 = vector.extract_strided_slice %37 {offsets = [0, 0], sizes = [8, 8], strides = [1, 1]} : vector<8x32xf32> to vector<8x8xf32>
    %41 = vector.extract_strided_slice %38 {offsets = [0, 0], sizes = [8, 8], strides = [1, 1]} : vector<8x32xf32> to vector<8x8xf32>
    %cst_18 = arith.constant dense<0.000000e+00> : vector<8x8xf32>
    %42 = tpu.matmul %39, %40, %cst_18 {dimension_numbers = #tpu.dot_dimension_numbers<[1], [1], [0], [0], [0, 0, 1, 0], [], []>} : vector<8x8xf32>, vector<8x8xf32>, vector<8x8xf32> -> vector<8x8xf32>
    %43 = vector.extract_strided_slice %1 {offsets = [0, 0, 0], sizes = [1, 8, 8], strides = [1, 1, 1]} : vector<4x8x8xf32> to vector<1x8x8xf32>
    %44 = vector.shape_cast %43 : vector<1x8x8xf32> to vector<8x8xf32>
    %45 = arith.addf %42, %44 : vector<8x8xf32>
    %cst_19 = arith.constant dense<0xFF800000> : vector<8xf32>
    %46 = vector.multi_reduction <maximumf>, %45, %cst_19 [1] : vector<8x8xf32> to vector<8xf32>
    %47 = vector.shape_cast %46 : vector<8xf32> to vector<8x1xf32>
    %48 = vector.broadcast %47 : vector<8x1xf32> to vector<8x8xf32>
    %49 = arith.subf %45, %48 : vector<8x8xf32>
    %50 = math.exp %49 : vector<8x8xf32>
    %cst_20 = arith.constant dense<0.000000e+00> : vector<8xf32>
    %51 = vector.multi_reduction <add>, %50, %cst_20 [1] : vector<8x8xf32> to vector<8xf32>
    %52 = vector.shape_cast %51 : vector<8xf32> to vector<8x1xf32>
    %53 = tpu.reciprocal %52 {approx = true} : vector<8x1xf32> -> vector<8x1xf32>
    %54 = arith.mulf %52, %53 : vector<8x1xf32>
    %cst_21 = arith.constant 2.000000e+00 : f32
    %55 = vector.broadcast %cst_21 : f32 to vector<8x1xf32>
    %56 = arith.subf %55, %54 : vector<8x1xf32>
    %57 = arith.mulf %53, %56 : vector<8x1xf32>
    %58 = vector.broadcast %57 : vector<8x1xf32> to vector<8x8xf32>
    %59 = arith.mulf %50, %58 : vector<8x8xf32>
    %cst_22 = arith.constant dense<0.000000e+00> : vector<8x8xf32>
    %60 = tpu.matmul %59, %41, %cst_22 {dimension_numbers = #tpu.dot_dimension_numbers<[1], [0], [0], [1], [0, 0, 1, 1], [], []>} : vector<8x8xf32>, vector<8x8xf32>, vector<8x8xf32> -> vector<8x8xf32>
    %c0_23 = arith.constant 0 : index
    %c0_24 = arith.constant 0 : index
    %61 = vector.load %arg15[%c0_23, %c0_24] : memref<16x32xf32, #tpu.memory_space<vmem>>, vector<8x8xf32>
    tpu.vector_store %arg15[%c0_23, %c0_24], %60 {strides = array<i32>} : memref<16x32xf32, #tpu.memory_space<vmem>>, vector<8x8xf32>,
    %62 = vector.extract_strided_slice %36 {offsets = [0, 8], sizes = [8, 8], strides = [1, 1]} : vector<8x32xf32> to vector<8x8xf32>
    %63 = vector.extract_strided_slice %37 {offsets = [0, 8], sizes = [8, 8], strides = [1, 1]} : vector<8x32xf32> to vector<8x8xf32>
    %64 = vector.extract_strided_slice %38 {offsets = [0, 8], sizes = [8, 8], strides = [1, 1]} : vector<8x32xf32> to vector<8x8xf32>
    %cst_25 = arith.constant dense<0.000000e+00> : vector<8x8xf32>
    %65 = tpu.matmul %62, %63, %cst_25 {dimension_numbers = #tpu.dot_dimension_numbers<[1], [1], [0], [0], [0, 0, 1, 0], [], []>} : vector<8x8xf32>, vector<8x8xf32>, vector<8x8xf32> -> vector<8x8xf32>
    %66 = vector.extract_strided_slice %1 {offsets = [1, 0, 0], sizes = [1, 8, 8], strides = [1, 1, 1]} : vector<4x8x8xf32> to vector<1x8x8xf32>
    %67 = vector.shape_cast %66 : vector<1x8x8xf32> to vector<8x8xf32>
    %68 = arith.addf %65, %67 : vector<8x8xf32>
    %cst_26 = arith.constant dense<0xFF800000> : vector<8xf32>
    %69 = vector.multi_reduction <maximumf>, %68, %cst_26 [1] : vector<8x8xf32> to vector<8xf32>
    %70 = vector.shape_cast %69 : vector<8xf32> to vector<8x1xf32>
    %71 = vector.broadcast %70 : vector<8x1xf32> to vector<8x8xf32>
    %72 = arith.subf %68, %71 : vector<8x8xf32>
    %73 = math.exp %72 : vector<8x8xf32>
    %cst_27 = arith.constant dense<0.000000e+00> : vector<8xf32>
    %74 = vector.multi_reduction <add>, %73, %cst_27 [1] : vector<8x8xf32> to vector<8xf32>
    %75 = vector.shape_cast %74 : vector<8xf32> to vector<8x1xf32>
    %76 = tpu.reciprocal %75 {approx = true} : vector<8x1xf32> -> vector<8x1xf32>
    %77 = arith.mulf %75, %76 : vector<8x1xf32>
    %cst_28 = arith.constant 2.000000e+00 : f32
    %78 = vector.broadcast %cst_28 : f32 to vector<8x1xf32>
    %79 = arith.subf %78, %77 : vector<8x1xf32>
    %80 = arith.mulf %76, %79 : vector<8x1xf32>
    %81 = vector.broadcast %80 : vector<8x1xf32> to vector<8x8xf32>
    %82 = arith.mulf %73, %81 : vector<8x8xf32>
    %cst_29 = arith.constant dense<0.000000e+00> : vector<8x8xf32>
    %83 = tpu.matmul %82, %64, %cst_29 {dimension_numbers = #tpu.dot_dimension_numbers<[1], [0], [0], [1], [0, 0, 1, 1], [], []>} : vector<8x8xf32>, vector<8x8xf32>, vector<8x8xf32> -> vector<8x8xf32>
    %c0_30 = arith.constant 0 : index
    %c8 = arith.constant 8 : index
    %84 = vector.load %arg15[%c0_30, %c8] : memref<16x32xf32, #tpu.memory_space<vmem>>, vector<8x8xf32>
    tpu.vector_store %arg15[%c0_30, %c8], %83 {strides = array<i32>} : memref<16x32xf32, #tpu.memory_space<vmem>>, vector<8x8xf32>,
    %85 = vector.extract_strided_slice %36 {offsets = [0, 16], sizes = [8, 8], strides = [1, 1]} : vector<8x32xf32> to vector<8x8xf32>
    %86 = vector.extract_strided_slice %37 {offsets = [0, 16], sizes = [8, 8], strides = [1, 1]} : vector<8x32xf32> to vector<8x8xf32>
    %87 = vector.extract_strided_slice %38 {offsets = [0, 16], sizes = [8, 8], strides = [1, 1]} : vector<8x32xf32> to vector<8x8xf32>
    %cst_31 = arith.constant dense<0.000000e+00> : vector<8x8xf32>
    %88 = tpu.matmul %85, %86, %cst_31 {dimension_numbers = #tpu.dot_dimension_numbers<[1], [1], [0], [0], [0, 0, 1, 0], [], []>} : vector<8x8xf32>, vector<8x8xf32>, vector<8x8xf32> -> vector<8x8xf32>
    %89 = vector.extract_strided_slice %1 {offsets = [2, 0, 0], sizes = [1, 8, 8], strides = [1, 1, 1]} : vector<4x8x8xf32> to vector<1x8x8xf32>
    %90 = vector.shape_cast %89 : vector<1x8x8xf32> to vector<8x8xf32>
    %91 = arith.addf %88, %90 : vector<8x8xf32>
    %cst_32 = arith.constant dense<0xFF800000> : vector<8xf32>
    %92 = vector.multi_reduction <maximumf>, %91, %cst_32 [1] : vector<8x8xf32> to vector<8xf32>
    %93 = vector.shape_cast %92 : vector<8xf32> to vector<8x1xf32>
    %94 = vector.broadcast %93 : vector<8x1xf32> to vector<8x8xf32>
    %95 = arith.subf %91, %94 : vector<8x8xf32>
    %96 = math.exp %95 : vector<8x8xf32>
    %cst_33 = arith.constant dense<0.000000e+00> : vector<8xf32>
    %97 = vector.multi_reduction <add>, %96, %cst_33 [1] : vector<8x8xf32> to vector<8xf32>
    %98 = vector.shape_cast %97 : vector<8xf32> to vector<8x1xf32>
    %99 = tpu.reciprocal %98 {approx = true} : vector<8x1xf32> -> vector<8x1xf32>
    %100 = arith.mulf %98, %99 : vector<8x1xf32>
    %cst_34 = arith.constant 2.000000e+00 : f32
    %101 = vector.broadcast %cst_34 : f32 to vector<8x1xf32>
    %102 = arith.subf %101, %100 : vector<8x1xf32>
    %103 = arith.mulf %99, %102 : vector<8x1xf32>
    %104 = vector.broadcast %103 : vector<8x1xf32> to vector<8x8xf32>
    %105 = arith.mulf %96, %104 : vector<8x8xf32>
    %cst_35 = arith.constant dense<0.000000e+00> : vector<8x8xf32>
    %106 = tpu.matmul %105, %87, %cst_35 {dimension_numbers = #tpu.dot_dimension_numbers<[1], [0], [0], [1], [0, 0, 1, 1], [], []>} : vector<8x8xf32>, vector<8x8xf32>, vector<8x8xf32> -> vector<8x8xf32>
    %c0_36 = arith.constant 0 : index
    %c16 = arith.constant 16 : index
    %107 = vector.load %arg15[%c0_36, %c16] : memref<16x32xf32, #tpu.memory_space<vmem>>, vector<8x8xf32>
    tpu.vector_store %arg15[%c0_36, %c16], %106 {strides = array<i32>} : memref<16x32xf32, #tpu.memory_space<vmem>>, vector<8x8xf32>,
    %108 = vector.extract_strided_slice %36 {offsets = [0, 24], sizes = [8, 8], strides = [1, 1]} : vector<8x32xf32> to vector<8x8xf32>
    %109 = vector.extract_strided_slice %37 {offsets = [0, 24], sizes = [8, 8], strides = [1, 1]} : vector<8x32xf32> to vector<8x8xf32>
    %110 = vector.extract_strided_slice %38 {offsets = [0, 24], sizes = [8, 8], strides = [1, 1]} : vector<8x32xf32> to vector<8x8xf32>
    %cst_37 = arith.constant dense<0.000000e+00> : vector<8x8xf32>
    %111 = tpu.matmul %108, %109, %cst_37 {dimension_numbers = #tpu.dot_dimension_numbers<[1], [1], [0], [0], [0, 0, 1, 0], [], []>} : vector<8x8xf32>, vector<8x8xf32>, vector<8x8xf32> -> vector<8x8xf32>
    %112 = vector.extract_strided_slice %1 {offsets = [3, 0, 0], sizes = [1, 8, 8], strides = [1, 1, 1]} : vector<4x8x8xf32> to vector<1x8x8xf32>
    %113 = vector.shape_cast %112 : vector<1x8x8xf32> to vector<8x8xf32>
    %114 = arith.addf %111, %113 : vector<8x8xf32>
    %cst_38 = arith.constant dense<0xFF800000> : vector<8xf32>
    %115 = vector.multi_reduction <maximumf>, %114, %cst_38 [1] : vector<8x8xf32> to vector<8xf32>
    %116 = vector.shape_cast %115 : vector<8xf32> to vector<8x1xf32>
    %117 = vector.broadcast %116 : vector<8x1xf32> to vector<8x8xf32>
    %118 = arith.subf %114, %117 : vector<8x8xf32>
    %119 = math.exp %118 : vector<8x8xf32>
    %cst_39 = arith.constant dense<0.000000e+00> : vector<8xf32>
    %120 = vector.multi_reduction <add>, %119, %cst_39 [1] : vector<8x8xf32> to vector<8xf32>
    %121 = vector.shape_cast %120 : vector<8xf32> to vector<8x1xf32>
    %122 = tpu.reciprocal %121 {approx = true} : vector<8x1xf32> -> vector<8x1xf32>
    %123 = arith.mulf %121, %122 : vector<8x1xf32>
    %cst_40 = arith.constant 2.000000e+00 : f32
    %124 = vector.broadcast %cst_40 : f32 to vector<8x1xf32>
    %125 = arith.subf %124, %123 : vector<8x1xf32>
    %126 = arith.mulf %122, %125 : vector<8x1xf32>
    %127 = vector.broadcast %126 : vector<8x1xf32> to vector<8x8xf32>
    %128 = arith.mulf %119, %127 : vector<8x8xf32>
    %cst_41 = arith.constant dense<0.000000e+00> : vector<8x8xf32>
    %129 = tpu.matmul %128, %110, %cst_41 {dimension_numbers = #tpu.dot_dimension_numbers<[1], [0], [0], [1], [0, 0, 1, 1], [], []>} : vector<8x8xf32>, vector<8x8xf32>, vector<8x8xf32> -> vector<8x8xf32>
    %c0_42 = arith.constant 0 : index
    %c24 = arith.constant 24 : index
    %130 = vector.load %arg15[%c0_42, %c24] : memref<16x32xf32, #tpu.memory_space<vmem>>, vector<8x8xf32>
    tpu.vector_store %arg15[%c0_42, %c24], %129 {strides = array<i32>} : memref<16x32xf32, #tpu.memory_space<vmem>>, vector<8x8xf32>,
    %131 = vector.extract_strided_slice %35 {offsets = [8, 0], sizes = [8, 32], strides = [1, 1]} : vector<16x96xf32> to vector<8x32xf32>
    %132 = vector.extract_strided_slice %35 {offsets = [8, 32], sizes = [8, 32], strides = [1, 1]} : vector<16x96xf32> to vector<8x32xf32>
    %133 = vector.extract_strided_slice %35 {offsets = [8, 64], sizes = [8, 32], strides = [1, 1]} : vector<16x96xf32> to vector<8x32xf32>
    %134 = vector.extract_strided_slice %131 {offsets = [0, 0], sizes = [8, 8], strides = [1, 1]} : vector<8x32xf32> to vector<8x8xf32>
    %135 = vector.extract_strided_slice %132 {offsets = [0, 0], sizes = [8, 8], strides = [1, 1]} : vector<8x32xf32> to vector<8x8xf32>
    %136 = vector.extract_strided_slice %133 {offsets = [0, 0], sizes = [8, 8], strides = [1, 1]} : vector<8x32xf32> to vector<8x8xf32>
    %cst_43 = arith.constant dense<0.000000e+00> : vector<8x8xf32>
    %137 = tpu.matmul %134, %135, %cst_43 {dimension_numbers = #tpu.dot_dimension_numbers<[1], [1], [0], [0], [0, 0, 1, 0], [], []>} : vector<8x8xf32>, vector<8x8xf32>, vector<8x8xf32> -> vector<8x8xf32>
    %138 = vector.extract_strided_slice %1 {offsets = [0, 0, 0], sizes = [1, 8, 8], strides = [1, 1, 1]} : vector<4x8x8xf32> to vector<1x8x8xf32>
    %139 = vector.shape_cast %138 : vector<1x8x8xf32> to vector<8x8xf32>
    %140 = arith.addf %137, %139 : vector<8x8xf32>
    %cst_44 = arith.constant dense<0xFF800000> : vector<8xf32>
    %141 = vector.multi_reduction <maximumf>, %140, %cst_44 [1] : vector<8x8xf32> to vector<8xf32>
    %142 = vector.shape_cast %141 : vector<8xf32> to vector<8x1xf32>
    %143 = vector.broadcast %142 : vector<8x1xf32> to vector<8x8xf32>
    %144 = arith.subf %140, %143 : vector<8x8xf32>
    %145 = math.exp %144 : vector<8x8xf32>
    %cst_45 = arith.constant dense<0.000000e+00> : vector<8xf32>
    %146 = vector.multi_reduction <add>, %145, %cst_45 [1] : vector<8x8xf32> to vector<8xf32>
    %147 = vector.shape_cast %146 : vector<8xf32> to vector<8x1xf32>
    %148 = tpu.reciprocal %147 {approx = true} : vector<8x1xf32> -> vector<8x1xf32>
    %149 = arith.mulf %147, %148 : vector<8x1xf32>
    %cst_46 = arith.constant 2.000000e+00 : f32
    %150 = vector.broadcast %cst_46 : f32 to vector<8x1xf32>
    %151 = arith.subf %150, %149 : vector<8x1xf32>
    %152 = arith.mulf %148, %151 : vector<8x1xf32>
    %153 = vector.broadcast %152 : vector<8x1xf32> to vector<8x8xf32>
    %154 = arith.mulf %145, %153 : vector<8x8xf32>
    %cst_47 = arith.constant dense<0.000000e+00> : vector<8x8xf32>
    %155 = tpu.matmul %154, %136, %cst_47 {dimension_numbers = #tpu.dot_dimension_numbers<[1], [0], [0], [1], [0, 0, 1, 1], [], []>} : vector<8x8xf32>, vector<8x8xf32>, vector<8x8xf32> -> vector<8x8xf32>
    %c8_48 = arith.constant 8 : index
    %c0_49 = arith.constant 0 : index
    %156 = vector.load %arg15[%c8_48, %c0_49] : memref<16x32xf32, #tpu.memory_space<vmem>>, vector<8x8xf32>
    tpu.vector_store %arg15[%c8_48, %c0_49], %155 {strides = array<i32>} : memref<16x32xf32, #tpu.memory_space<vmem>>, vector<8x8xf32>,
    %157 = vector.extract_strided_slice %131 {offsets = [0, 8], sizes = [8, 8], strides = [1, 1]} : vector<8x32xf32> to vector<8x8xf32>
    %158 = vector.extract_strided_slice %132 {offsets = [0, 8], sizes = [8, 8], strides = [1, 1]} : vector<8x32xf32> to vector<8x8xf32>
    %159 = vector.extract_strided_slice %133 {offsets = [0, 8], sizes = [8, 8], strides = [1, 1]} : vector<8x32xf32> to vector<8x8xf32>
    %cst_50 = arith.constant dense<0.000000e+00> : vector<8x8xf32>
    %160 = tpu.matmul %157, %158, %cst_50 {dimension_numbers = #tpu.dot_dimension_numbers<[1], [1], [0], [0], [0, 0, 1, 0], [], []>} : vector<8x8xf32>, vector<8x8xf32>, vector<8x8xf32> -> vector<8x8xf32>
    %161 = vector.extract_strided_slice %1 {offsets = [1, 0, 0], sizes = [1, 8, 8], strides = [1, 1, 1]} : vector<4x8x8xf32> to vector<1x8x8xf32>
    %162 = vector.shape_cast %161 : vector<1x8x8xf32> to vector<8x8xf32>
    %163 = arith.addf %160, %162 : vector<8x8xf32>
    %cst_51 = arith.constant dense<0xFF800000> : vector<8xf32>
    %164 = vector.multi_reduction <maximumf>, %163, %cst_51 [1] : vector<8x8xf32> to vector<8xf32>
    %165 = vector.shape_cast %164 : vector<8xf32> to vector<8x1xf32>
    %166 = vector.broadcast %165 : vector<8x1xf32> to vector<8x8xf32>
    %167 = arith.subf %163, %166 : vector<8x8xf32>
    %168 = math.exp %167 : vector<8x8xf32>
    %cst_52 = arith.constant dense<0.000000e+00> : vector<8xf32>
    %169 = vector.multi_reduction <add>, %168, %cst_52 [1] : vector<8x8xf32> to vector<8xf32>
    %170 = vector.shape_cast %169 : vector<8xf32> to vector<8x1xf32>
    %171 = tpu.reciprocal %170 {approx = true} : vector<8x1xf32> -> vector<8x1xf32>
    %172 = arith.mulf %170, %171 : vector<8x1xf32>
    %cst_53 = arith.constant 2.000000e+00 : f32
    %173 = vector.broadcast %cst_53 : f32 to vector<8x1xf32>
    %174 = arith.subf %173, %172 : vector<8x1xf32>
    %175 = arith.mulf %171, %174 : vector<8x1xf32>
    %176 = vector.broadcast %175 : vector<8x1xf32> to vector<8x8xf32>
    %177 = arith.mulf %168, %176 : vector<8x8xf32>
    %cst_54 = arith.constant dense<0.000000e+00> : vector<8x8xf32>
    %178 = tpu.matmul %177, %159, %cst_54 {dimension_numbers = #tpu.dot_dimension_numbers<[1], [0], [0], [1], [0, 0, 1, 1], [], []>} : vector<8x8xf32>, vector<8x8xf32>, vector<8x8xf32> -> vector<8x8xf32>
    %c8_55 = arith.constant 8 : index
    %c8_56 = arith.constant 8 : index
    %179 = vector.load %arg15[%c8_55, %c8_56] : memref<16x32xf32, #tpu.memory_space<vmem>>, vector<8x8xf32>
    tpu.vector_store %arg15[%c8_55, %c8_56], %178 {strides = array<i32>} : memref<16x32xf32, #tpu.memory_space<vmem>>, vector<8x8xf32>,
    %180 = vector.extract_strided_slice %131 {offsets = [0, 16], sizes = [8, 8], strides = [1, 1]} : vector<8x32xf32> to vector<8x8xf32>
    %181 = vector.extract_strided_slice %132 {offsets = [0, 16], sizes = [8, 8], strides = [1, 1]} : vector<8x32xf32> to vector<8x8xf32>
    %182 = vector.extract_strided_slice %133 {offsets = [0, 16], sizes = [8, 8], strides = [1, 1]} : vector<8x32xf32> to vector<8x8xf32>
    %cst_57 = arith.constant dense<0.000000e+00> : vector<8x8xf32>
    %183 = tpu.matmul %180, %181, %cst_57 {dimension_numbers = #tpu.dot_dimension_numbers<[1], [1], [0], [0], [0, 0, 1, 0], [], []>} : vector<8x8xf32>, vector<8x8xf32>, vector<8x8xf32> -> vector<8x8xf32>
    %184 = vector.extract_strided_slice %1 {offsets = [2, 0, 0], sizes = [1, 8, 8], strides = [1, 1, 1]} : vector<4x8x8xf32> to vector<1x8x8xf32>
    %185 = vector.shape_cast %184 : vector<1x8x8xf32> to vector<8x8xf32>
    %186 = arith.addf %183, %185 : vector<8x8xf32>
    %cst_58 = arith.constant dense<0xFF800000> : vector<8xf32>
    %187 = vector.multi_reduction <maximumf>, %186, %cst_58 [1] : vector<8x8xf32> to vector<8xf32>
    %188 = vector.shape_cast %187 : vector<8xf32> to vector<8x1xf32>
    %189 = vector.broadcast %188 : vector<8x1xf32> to vector<8x8xf32>
    %190 = arith.subf %186, %189 : vector<8x8xf32>
    %191 = math.exp %190 : vector<8x8xf32>
    %cst_59 = arith.constant dense<0.000000e+00> : vector<8xf32>
    %192 = vector.multi_reduction <add>, %191, %cst_59 [1] : vector<8x8xf32> to vector<8xf32>
    %193 = vector.shape_cast %192 : vector<8xf32> to vector<8x1xf32>
    %194 = tpu.reciprocal %193 {approx = true} : vector<8x1xf32> -> vector<8x1xf32>
    %195 = arith.mulf %193, %194 : vector<8x1xf32>
    %cst_60 = arith.constant 2.000000e+00 : f32
    %196 = vector.broadcast %cst_60 : f32 to vector<8x1xf32>
    %197 = arith.subf %196, %195 : vector<8x1xf32>
    %198 = arith.mulf %194, %197 : vector<8x1xf32>
    %199 = vector.broadcast %198 : vector<8x1xf32> to vector<8x8xf32>
    %200 = arith.mulf %191, %199 : vector<8x8xf32>
    %cst_61 = arith.constant dense<0.000000e+00> : vector<8x8xf32>
    %201 = tpu.matmul %200, %182, %cst_61 {dimension_numbers = #tpu.dot_dimension_numbers<[1], [0], [0], [1], [0, 0, 1, 1], [], []>} : vector<8x8xf32>, vector<8x8xf32>, vector<8x8xf32> -> vector<8x8xf32>
    %c8_62 = arith.constant 8 : index
    %c16_63 = arith.constant 16 : index
    %202 = vector.load %arg15[%c8_62, %c16_63] : memref<16x32xf32, #tpu.memory_space<vmem>>, vector<8x8xf32>
    tpu.vector_store %arg15[%c8_62, %c16_63], %201 {strides = array<i32>} : memref<16x32xf32, #tpu.memory_space<vmem>>, vector<8x8xf32>,
    %203 = vector.extract_strided_slice %131 {offsets = [0, 24], sizes = [8, 8], strides = [1, 1]} : vector<8x32xf32> to vector<8x8xf32>
    %204 = vector.extract_strided_slice %132 {offsets = [0, 24], sizes = [8, 8], strides = [1, 1]} : vector<8x32xf32> to vector<8x8xf32>
    %205 = vector.extract_strided_slice %133 {offsets = [0, 24], sizes = [8, 8], strides = [1, 1]} : vector<8x32xf32> to vector<8x8xf32>
    %cst_64 = arith.constant dense<0.000000e+00> : vector<8x8xf32>
    %206 = tpu.matmul %203, %204, %cst_64 {dimension_numbers = #tpu.dot_dimension_numbers<[1], [1], [0], [0], [0, 0, 1, 0], [], []>} : vector<8x8xf32>, vector<8x8xf32>, vector<8x8xf32> -> vector<8x8xf32>
    %207 = vector.extract_strided_slice %1 {offsets = [3, 0, 0], sizes = [1, 8, 8], strides = [1, 1, 1]} : vector<4x8x8xf32> to vector<1x8x8xf32>
    %208 = vector.shape_cast %207 : vector<1x8x8xf32> to vector<8x8xf32>
    %209 = arith.addf %206, %208 : vector<8x8xf32>
    %cst_65 = arith.constant dense<0xFF800000> : vector<8xf32>
    %210 = vector.multi_reduction <maximumf>, %209, %cst_65 [1] : vector<8x8xf32> to vector<8xf32>
    %211 = vector.shape_cast %210 : vector<8xf32> to vector<8x1xf32>
    %212 = vector.broadcast %211 : vector<8x1xf32> to vector<8x8xf32>
    %213 = arith.subf %209, %212 : vector<8x8xf32>
    %214 = math.exp %213 : vector<8x8xf32>
    %cst_66 = arith.constant dense<0.000000e+00> : vector<8xf32>
    %215 = vector.multi_reduction <add>, %214, %cst_66 [1] : vector<8x8xf32> to vector<8xf32>
    %216 = vector.shape_cast %215 : vector<8xf32> to vector<8x1xf32>
    %217 = tpu.reciprocal %216 {approx = true} : vector<8x1xf32> -> vector<8x1xf32>
    %218 = arith.mulf %216, %217 : vector<8x1xf32>
    %cst_67 = arith.constant 2.000000e+00 : f32
    %219 = vector.broadcast %cst_67 : f32 to vector<8x1xf32>
    %220 = arith.subf %219, %218 : vector<8x1xf32>
    %221 = arith.mulf %217, %220 : vector<8x1xf32>
    %222 = vector.broadcast %221 : vector<8x1xf32> to vector<8x8xf32>
    %223 = arith.mulf %214, %222 : vector<8x8xf32>
    %cst_68 = arith.constant dense<0.000000e+00> : vector<8x8xf32>
    %224 = tpu.matmul %223, %205, %cst_68 {dimension_numbers = #tpu.dot_dimension_numbers<[1], [0], [0], [1], [0, 0, 1, 1], [], []>} : vector<8x8xf32>, vector<8x8xf32>, vector<8x8xf32> -> vector<8x8xf32>
    %c8_69 = arith.constant 8 : index
    %c24_70 = arith.constant 24 : index
    %225 = vector.load %arg15[%c8_69, %c24_70] : memref<16x32xf32, #tpu.memory_space<vmem>>, vector<8x8xf32>
    tpu.vector_store %arg15[%c8_69, %c24_70], %224 {strides = array<i32>} : memref<16x32xf32, #tpu.memory_space<vmem>>, vector<8x8xf32>,
    %c0_71 = arith.constant 0 : index
    %c0_72 = arith.constant 0 : index
    %226 = vector.load %arg15[%c0_71, %c0_72] : memref<16x32xf32, #tpu.memory_space<vmem>>, vector<16x32xf32>
    %c0_73 = arith.constant 0 : index
    %c0_74 = arith.constant 0 : index
    %227 = vector.load %arg6[%c0_73, %c0_74] : memref<32x32xf32, #tpu.memory_space<vmem>>, vector<32x32xf32>
    %cst_75 = arith.constant dense<0.000000e+00> : vector<16x32xf32>
    %228 = tpu.matmul %226, %227, %cst_75 {dimension_numbers = #tpu.dot_dimension_numbers<[1], [0], [0], [1], [0, 0, 1, 1], [], []>} : vector<16x32xf32>, vector<32x32xf32>, vector<16x32xf32> -> vector<16x32xf32>
    %c0_76 = arith.constant 0 : index
    %c0_77 = arith.constant 0 : index
    %229 = vector.load %arg7[%c0_76, %c0_77] : memref<1x32xf32, #tpu.memory_space<vmem>>, vector<1x32xf32>
    %230 = vector.broadcast %229 : vector<1x32xf32> to vector<16x32xf32>
    %231 = arith.addf %228, %230 : vector<16x32xf32>
    %232 = arith.addf %0, %231 : vector<16x32xf32>
    %c0_78 = arith.constant 0 : index
    %c0_79 = arith.constant 0 : index
    %233 = vector.load %arg8[%c0_78, %c0_79] : memref<1x32xf32, #tpu.memory_space<vmem>>, vector<1x32xf32>
    %c0_80 = arith.constant 0 : index
    %c0_81 = arith.constant 0 : index
    %234 = vector.load %arg9[%c0_80, %c0_81] : memref<1x32xf32, #tpu.memory_space<vmem>>, vector<1x32xf32>
    %cst_82 = arith.constant dense<0.000000e+00> : vector<16xf32>
    %235 = vector.multi_reduction <add>, %232, %cst_82 [1] : vector<16x32xf32> to vector<16xf32>
    %236 = vector.shape_cast %235 : vector<16xf32> to vector<16x1xf32>
    %cst_83 = arith.constant 3.200000e+01 : f32
    %237 = vector.broadcast %cst_83 : f32 to vector<16x1xf32>
    %238 = arith.divf %236, %237 : vector<16x1xf32>
    %239 = vector.broadcast %238 : vector<16x1xf32> to vector<16x32xf32>
    %240 = arith.subf %232, %239 : vector<16x32xf32>
    %241 = arith.mulf %240, %240 : vector<16x32xf32>
    %cst_84 = arith.constant dense<0.000000e+00> : vector<16xf32>
    %242 = vector.multi_reduction <add>, %241, %cst_84 [1] : vector<16x32xf32> to vector<16xf32>
    %243 = vector.shape_cast %242 : vector<16xf32> to vector<16x1xf32>
    %cst_85 = arith.constant 0.0322580636 : f32
    %244 = vector.broadcast %cst_85 : f32 to vector<16x1xf32>
    %245 = arith.mulf %243, %244 : vector<16x1xf32>
    %246 = math.sqrt %245 : vector<16x1xf32>
    %cst_86 = arith.constant 9.99999997E-7 : f32
    %247 = vector.broadcast %cst_86 : f32 to vector<16x1xf32>
    %248 = arith.addf %246, %247 : vector<16x1xf32>
    %249 = tpu.reciprocal %248 {approx = true} : vector<16x1xf32> -> vector<16x1xf32>
    %250 = arith.mulf %248, %249 : vector<16x1xf32>
    %cst_87 = arith.constant 2.000000e+00 : f32
    %251 = vector.broadcast %cst_87 : f32 to vector<16x1xf32>
    %252 = arith.subf %251, %250 : vector<16x1xf32>
    %253 = arith.mulf %249, %252 : vector<16x1xf32>
    %254 = vector.broadcast %238 : vector<16x1xf32> to vector<16x32xf32>
    %255 = arith.subf %232, %254 : vector<16x32xf32>
    %256 = vector.broadcast %233 : vector<1x32xf32> to vector<16x32xf32>
    %257 = arith.mulf %256, %255 : vector<16x32xf32>
    %258 = vector.broadcast %253 : vector<16x1xf32> to vector<16x32xf32>
    %259 = arith.mulf %257, %258 : vector<16x32xf32>
    %260 = vector.broadcast %234 : vector<1x32xf32> to vector<16x32xf32>
    %261 = arith.addf %259, %260 : vector<16x32xf32>
    %c0_88 = arith.constant 0 : index
    %c0_89 = arith.constant 0 : index
    %262 = vector.load %arg10[%c0_88, %c0_89] : memref<32x64xf32, #tpu.memory_space<vmem>>, vector<32x64xf32>
    %cst_90 = arith.constant dense<0.000000e+00> : vector<16x64xf32>
    %263 = tpu.matmul %261, %262, %cst_90 {dimension_numbers = #tpu.dot_dimension_numbers<[1], [0], [0], [1], [0, 0, 1, 1], [], []>} : vector<16x32xf32>, vector<32x64xf32>, vector<16x64xf32> -> vector<16x64xf32>
    %c0_91 = arith.constant 0 : index
    %c0_92 = arith.constant 0 : index
    %264 = vector.load %arg11[%c0_91, %c0_92] : memref<1x64xf32, #tpu.memory_space<vmem>>, vector<1x64xf32>
    %265 = vector.broadcast %264 : vector<1x64xf32> to vector<16x64xf32>
    %266 = arith.addf %263, %265 : vector<16x64xf32>
    %cst_93 = arith.constant 0.000000e+00 : f32
    %267 = vector.broadcast %cst_93 : f32 to vector<16x64xf32>
    %268 = arith.maximumf %266, %267 : vector<16x64xf32>
    %c0_94 = arith.constant 0 : index
    %c0_95 = arith.constant 0 : index
    %269 = vector.load %arg12[%c0_94, %c0_95] : memref<64x32xf32, #tpu.memory_space<vmem>>, vector<64x32xf32>
    %cst_96 = arith.constant dense<0.000000e+00> : vector<16x32xf32>
    %270 = tpu.matmul %268, %269, %cst_96 {dimension_numbers = #tpu.dot_dimension_numbers<[1], [0], [0], [1], [0, 0, 1, 1], [], []>} : vector<16x64xf32>, vector<64x32xf32>, vector<16x32xf32> -> vector<16x32xf32>
    %c0_97 = arith.constant 0 : index
    %c0_98 = arith.constant 0 : index
    %271 = vector.load %arg13[%c0_97, %c0_98] : memref<1x32xf32, #tpu.memory_space<vmem>>, vector<1x32xf32>
    %272 = vector.broadcast %271 : vector<1x32xf32> to vector<16x32xf32>
    %273 = arith.addf %270, %272 : vector<16x32xf32>
    %274 = arith.addf %232, %273 : vector<16x32xf32>
    %c0_99 = arith.constant 0 : index
    %c0_100 = arith.constant 0 : index
    %275 = vector.load %arg14[%c0_99, %c0_100] : memref<16x32xf32, #tpu.memory_space<vmem>>, vector<16x32xf32>
    tpu.vector_store %arg14[%c0_99, %c0_100], %274 {strides = array<i32>} : memref<16x32xf32, #tpu.memory_space<vmem>>, vector<16x32xf32>,
    return
  }
}

</mosaic_0001>

<llo_original>
// kernel: tpu_custom_call.1
$region0: #{tpu_custom_call.1}
  #allocation0 [shape = 'u32[]', space=smem, size = 0x4, offset = 0x4, fixed_abs, tag = 'smem constant byte address 0x4 - core index']
  #allocation1 [shape = 'u32[144,128]{1,0:T(1,128)}', space=vmem, size = 0x12000, scoped, tag = 'internal scratch']
  #allocation2 [shape = 'f32[16,32]{1,0:T(8,128)}', space=vmem, size = 0x2000, scoped, tag = 'scratch operand']
  %s0 = inlined_call_operand.hbm [shape: f32[16,32], index: 0, kind: input, shape index: {}]
  %s1 = inlined_call_operand.vmem [shape: f32[4,8,8], index: 1, kind: input, shape index: {}]
  %s2 = inlined_call_operand.vmem [shape: f32[1,32], index: 2, kind: input, shape index: {}]
  %s3 = inlined_call_operand.vmem [shape: f32[1,32], index: 3, kind: input, shape index: {}]
  %s4 = inlined_call_operand.vmem [shape: f32[32,96], index: 4, kind: input, shape index: {}]
  %s5 = inlined_call_operand.vmem [shape: f32[1,96], index: 5, kind: input, shape index: {}]
  %s6 = inlined_call_operand.vmem [shape: f32[32,32], index: 6, kind: input, shape index: {}]
  %s7 = inlined_call_operand.vmem [shape: f32[1,32], index: 7, kind: input, shape index: {}]
  %s8 = inlined_call_operand.vmem [shape: f32[1,32], index: 8, kind: input, shape index: {}]
  %s9 = inlined_call_operand.vmem [shape: f32[1,32], index: 9, kind: input, shape index: {}]
  %s10 = inlined_call_operand.hbm [shape: f32[32,64], index: 10, kind: input, shape index: {}]
  %s11 = inlined_call_operand.vmem [shape: f32[1,64], index: 11, kind: input, shape index: {}]
  %s12 = inlined_call_operand.vmem [shape: f32[64,32], index: 12, kind: input, shape index: {}]
  %s13 = inlined_call_operand.vmem [shape: f32[1,32], index: 13, kind: input, shape index: {}]
  %s14 = inlined_call_operand.hbm [shape: f32[16,32], index: 14, kind: output, shape index: {}]
  %s15 = sld [smem:[#allocation0]]
  $region74: #{tpu_custom_call.1} parent=0
    _
  %s17 = ssub.s32 1, %s15
  %s18 = scalar_select 0, %s17, %s15
  $region1: #{tpu_custom_call.1} parent=0
    #allocation3 [shape = 'u8[8192]{0}', space=vmem, size = 0x2000, scoped, tag = 'input window, operand 0, single buffered']
    #allocation4 [shape = 's32[1]{0}', space=sflag, size = 0x4, scoped, tag = 'scoped memory for tpu_custom_call.1']
    #allocation5 [shape = 's32[1]{0}', space=sflag, size = 0x4, scoped, tag = 'scoped memory for tpu_custom_call.1']
    #allocation6 [shape = 'u8[16384]{0}', space=vmem, size = 0x4000, scoped, tag = 'input window, operand 10, single buffered']
    #allocation7 [shape = 's32[1]{0}', space=sflag, size = 0x4, scoped, tag = 'scoped memory for tpu_custom_call.1']
    #allocation8 [shape = 'u8[8192]{0}', space=vmem, size = 0x2000, scoped, tag = 'output window, operand 0, single buffered']
    %19 = vsyncpa [#allocation4], 0
    %20 = vsyncpa [#allocation7], 0
    %21 = vsyncpa [#allocation5], 0
    // Predicated region
    $region2: #{tpu_custom_call.1} parent=1 // pred_check
      _
    $region3: #{tpu_custom_call.1} parent=1 // pred_check_branch
      %23 = sbr.rel (0) target = $region5
    $region4: #{tpu_custom_call.1} parent=1 // pred_region
      %s25 = ssub.s32 256, 256
      %26 = vsyncadd [#allocation4], %s25
      %s27 = sshll.u32 [#allocation3], 4
      %s28 = int_to_ptr.vmem [resolvable:$true] %s27
      %33 = dma.hbm_to_vmem [thread:$0]  %s0, 256, %s28, [#allocation4], 128, 128, 8
    $region5: #{tpu_custom_call.1} parent=1 // pred_fallthru
      _
    // Predicated region
    $region6: #{tpu_custom_call.1} parent=1 // pred_check
      _
    $region7: #{tpu_custom_call.1} parent=1 // pred_check_branch
      %35 = sbr.rel (0) target = $region9
    $region8: #{tpu_custom_call.1} parent=1 // pred_region
      _
    $region9: #{tpu_custom_call.1} parent=1 // pred_fallthru
      _
    // Predicated region
    $region10: #{tpu_custom_call.1} parent=1 // pred_check
      _
    $region11: #{tpu_custom_call.1} parent=1 // pred_check_branch
      %37 = sbr.rel (0) target = $region13
    $region12: #{tpu_custom_call.1} parent=1 // pred_region
      _
    $region13: #{tpu_custom_call.1} parent=1 // pred_fallthru
      _
    // Predicated region
    $region14: #{tpu_custom_call.1} parent=1 // pred_check
      _
    $region15: #{tpu_custom_call.1} parent=1 // pred_check_branch
      %39 = sbr.rel (0) target = $region17
    $region16: #{tpu_custom_call.1} parent=1 // pred_region
      _
    $region17: #{tpu_custom_call.1} parent=1 // pred_fallthru
      _
    // Predicated region
    $region18: #{tpu_custom_call.1} parent=1 // pred_check
      _
    $region19: #{tpu_custom_call.1} parent=1 // pred_check_branch
      %41 = sbr.rel (0) target = $region21
    $region20: #{tpu_custom_call.1} parent=1 // pred_region
      _
    $region21: #{tpu_custom_call.1} parent=1 // pred_fallthru
      _
    // Predicated region
    $region22: #{tpu_custom_call.1} parent=1 // pred_check
      _
    $region23: #{tpu_custom_call.1} parent=1 // pred_check_branch
      %43 = sbr.rel (0) target = $region25
    $region24: #{tpu_custom_call.1} parent=1 // pred_region
      _
    $region25: #{tpu_custom_call.1} parent=1 // pred_fallthru
      _
    // Predicated region
    $region26: #{tpu_custom_call.1} parent=1 // pred_check
      _
    $region27: #{tpu_custom_call.1} parent=1 // pred_check_branch
      %45 = sbr.rel (0) target = $region29
    $region28: #{tpu_custom_call.1} parent=1 // pred_region
      _
    $region29: #{tpu_custom_call.1} parent=1 // pred_fallthru
      _
    // Predicated region
    $region30: #{tpu_custom_call.1} parent=1 // pred_check
      _
    $region31: #{tpu_custom_call.1} parent=1 // pred_check_branch
      %47 = sbr.rel (0) target = $region33
    $region32: #{tpu_custom_call.1} parent=1 // pred_region
      _
    $region33: #{tpu_custom_call.1} parent=1 // pred_fallthru
      _
    // Predicated region
    $region34: #{tpu_custom_call.1} parent=1 // pred_check
      _
    $region35: #{tpu_custom_call.1} parent=1 // pred_check_branch
      %49 = sbr.rel (0) target = $region37
    $region36: #{tpu_custom_call.1} parent=1 // pred_region
      _
    $region37: #{tpu_custom_call.1} parent=1 // pred_fallthru
      _
    // Predicated region
    $region38: #{tpu_custom_call.1} parent=1 // pred_check
      _
    $region39: #{tpu_custom_call.1} parent=1 // pred_check_branch
      %51 = sbr.rel (0) target = $region41
    $region40: #{tpu_custom_call.1} parent=1 // pred_region
      _
    $region41: #{tpu_custom_call.1} parent=1 // pred_fallthru
      _
    // Predicated region
    $region42: #{tpu_custom_call.1} parent=1 // pred_check
      _
    $region43: #{tpu_custom_call.1} parent=1 // pred_check_branch
      %53 = sbr.rel (0) target = $region45
    $region44: #{tpu_custom_call.1} parent=1 // pred_region
      %s55 = ssub.s32 512, 512
      %56 = vsyncadd [#allocation7], %s55
      %s57 = sshll.u32 [#allocation6], 4
      %s58 = int_to_ptr.vmem [resolvable:$true] %s57
      %63 = dma.hbm_to_vmem [thread:$0]  %s10, 512, %s58, [#allocation7], 128, 128, 8
    $region45: #{tpu_custom_call.1} parent=1 // pred_fallthru
      _
    // Predicated region
    $region46: #{tpu_custom_call.1} parent=1 // pred_check
      _
    $region47: #{tpu_custom_call.1} parent=1 // pred_check_branch
      %65 = sbr.rel (0) target = $region49
    $region48: #{tpu_custom_call.1} parent=1 // pred_region
      _
    $region49: #{tpu_custom_call.1} parent=1 // pred_fallthru
      _
    // Predicated region
    $region50: #{tpu_custom_call.1} parent=1 // pred_check
      _
    $region51: #{tpu_custom_call.1} parent=1 // pred_check_branch
      %67 = sbr.rel (0) target = $region53
    $region52: #{tpu_custom_call.1} parent=1 // pred_region
      _
    $region53: #{tpu_custom_call.1} parent=1 // pred_fallthru
      _
    // Predicated region
    $region54: #{tpu_custom_call.1} parent=1 // pred_check
      _
    $region55: #{tpu_custom_call.1} parent=1 // pred_check_branch
      %69 = sbr.rel (0) target = $region57
    $region56: #{tpu_custom_call.1} parent=1 // pred_region
      _
    $region57: #{tpu_custom_call.1} parent=1 // pred_fallthru
      _
    // Predicated region
    $region58: #{tpu_custom_call.1} parent=1 // pred_check
      _
    $region59: #{tpu_custom_call.1} parent=1 // pred_check_branch
      %71 = sbr.rel (0) target = $region61
    $region60: #{tpu_custom_call.1} parent=1 // pred_region
      %72 = dma.done [#allocation4], 256
    $region61: #{tpu_custom_call.1} parent=1 // pred_fallthru
      _
    // Predicated region
    $region62: #{tpu_custom_call.1} parent=1 // pred_check
      _
    $region63: #{tpu_custom_call.1} parent=1 // pred_check_branch
      %74 = sbr.rel (0) target = $region65
    $region64: #{tpu_custom_call.1} parent=1 // pred_region
      %75 = dma.done [#allocation7], 512
    $region65: #{tpu_custom_call.1} parent=1 // pred_fallthru
      _
    %v76 = vld [vmem:[#allocation3] sm:$0xff]
    %v77 = vld [vmem:[#allocation3 + $0x8] sm:$0xff]
    %v78 = vld [vmem:[%s1] sm:$0xff]
    %v79 = vld [vmem:[%s1 + $0x8] sm:$0xff]
    %v80 = vld [vmem:[%s1 + $0x10] sm:$0xff]
    %v81 = vld [vmem:[%s1 + $0x18] sm:$0xff]
    %v82 = vld [vmem:[%s2] sm:$0x1]
    %v83 = vld [vmem:[%s3] sm:$0x1]
    %vm84 = vcmask 261120
    %v85 = vsel %vm84, %v76, 0.0
    %86 = vadd.xlane.f32.xlu0 %v85
    %v87 = vpop.xlane.xlu0 %86
    %v88 = vsel %vm84, %v77, 0.0
    %89 = vadd.xlane.f32.xlu0 %v88
    %v90 = vpop.xlane.xlu0 %89
    %v91 = vrcp.pop 32.0
    %v92 = vmul.f32 %v87, %v91
    %v93 = vmul.f32 %v90, %v91
    %v94 = vsub.f32 %v76, %v92
    %v95 = vsub.f32 %v77, %v93
    %v96 = vmul.f32 %v94, %v94
    %v97 = vmul.f32 %v95, %v95
    %v98 = vsel %vm84, %v96, 0.0
    %99 = vadd.xlane.f32.xlu0 %v98
    %v100 = vpop.xlane.xlu0 %99
    %v101 = vsel %vm84, %v97, 0.0
    %102 = vadd.xlane.f32.xlu0 %v101
    %v103 = vpop.xlane.xlu0 %102
    %v104 = vmul.f32 %v100, 0.032258064
    %v105 = vmul.f32 %v103, 0.032258064
    %v106 = vrsqrt.pop %v104
    %v107 = vmul.f32 %v104, %v106
    %vm108 = vcmp.eq.f32.partialorder %v104, inf
    %v109 = vsel %vm108, %v104, %v107
    %vm110 = vcmp.eq.f32.partialorder %v104, 0.0
    %v111 = vand.u32 %v104, 2147483648
    %v112 = vsel %vm110, %v111, %v109
    %v113 = vrsqrt.pop %v105
    %v114 = vmul.f32 %v105, %v113
    %vm115 = vcmp.eq.f32.partialorder %v105, inf
    %v116 = vsel %vm115, %v105, %v114
    %vm117 = vcmp.eq.f32.partialorder %v105, 0.0
    %v118 = vand.u32 %v105, 2147483648
    %v119 = vsel %vm117, %v118, %v116
    %v120 = vadd.f32 %v112, 1e-06
    %v121 = vadd.f32 %v119, 1e-06
    %v122 = vrcp.pop %v120
    %v123 = vrcp.pop %v121
    %v124 = vmul.f32 %v120, %v122
    %v125 = vmul.f32 %v121, %v123
    %v126 = vsub.f32 2.0, %v124
    %v127 = vsub.f32 2.0, %v125
    %v128 = vmul.f32 %v122, %v126
    %v129 = vmul.f32 %v123, %v127
    %v131 = vlaneseq
    %v132 = vshrl.u32 %v131, 7
    %v133 = vsub.s32 0, %v132
    %v134 = vrot.slane %v82, %v133
    %v136 = vmul.f32 %v134, %v94
    %v137 = vmul.f32 %v134, %v95
    %v138 = vmul.f32 %v136, %v128
    %v139 = vmul.f32 %v137, %v129
    %v141 = vlaneseq
    %v142 = vshrl.u32 %v141, 7
    %v143 = vsub.s32 0, %v142
    %v144 = vrot.slane %v83, %v143
    %v146 = vadd.f32 %v138, %v144
    %v147 = vadd.f32 %v139, %v144
    %v148 = vld [vmem:[%s4] sm:$0xff]
    %v149 = vld [vmem:[%s4 + $0x8] sm:$0xff]
    %v150 = vld [vmem:[%s4 + $0x10] sm:$0xff]
    %v151 = vld [vmem:[%s4 + $0x18] sm:$0xff]
    %v152 = vld [vmem:[%s5] sm:$0x1]
    %v154 = vlaneseq
    %v155 = vshrl.u32 %v154, 7
    %v156 = vsub.s32 0, %v155
    %v157 = vrot.slane %v152, %v156
    %v160 = vsel %vm84, %v146, 0
    %v163 = vsel %vm84, %v147, 0
    %165 = vmatprep.subr.mxu0 0.0
    %166 = vmatpush1.msra.mxu0 %v148
    %167 = vmatprep.subr.mxu0 0.0
    %168 = vmatpush1.msra.mxu0 %v149
    %169 = vmatprep.subr.mxu0 0.0
    %170 = vmatpush1.msra.mxu0 %v150
    %171 = vmatprep.subr.mxu0 0.0
    %172 = vmatpush1.msra.mxu0 %v151
    %173 = vmatprep.subr.mxu0 0.0
    %174 = vmatpush1.msra.mxu0 0.0
    %175 = vmatprep.subr.mxu0 0.0
    %176 = vmatpush1.msra.mxu0 0.0
    %177 = vmatprep.subr.mxu0 0.0
    %178 = vmatpush1.msra.mxu0 0.0
    %179 = vmatprep.subr.mxu0 0.0
    %180 = vmatpush1.msra.mxu0 0.0
    %181 = vmatprep.subr.mxu0 0.0
    %182 = vmatpush1.msra.mxu0 0.0
    %183 = vmatprep.subr.mxu0 0.0
    %184 = vmatpush1.msra.mxu0 0.0
    %185 = vmatprep.subr.mxu0 0.0
    %186 = vmatpush1.msra.mxu0 0.0
    %187 = vmatprep.subr.mxu0 0.0
    %188 = vmatpush1.msra.mxu0 0.0
    %189 = vmatprep.subr.mxu0 0.0
    %190 = vmatpush1.msra.mxu0 0.0
    %191 = vmatprep.subr.mxu0 0.0
    %192 = vmatpush1.msra.mxu0 0.0
    %193 = vmatprep.subr.mxu0 0.0
    %194 = vmatpush1.msra.mxu0 0.0
    %195 = vmatprep.subr.mxu0 0.0
    %196 = vmatpush1.msra.mxu0 0.0
    %197 = vmatprep.subr.mxu0 0.0
    %198 = vmatpush1.msra.mxu0 0.0
    %199 = vmatprep.subr.mxu0 0.0
    %200 = vmatpush1.msra.mxu0 0.0
    %201 = vmatprep.subr.mxu0 0.0
    %202 = vmatpush1.msra.mxu0 0.0
    %203 = vmatprep.subr.mxu0 0.0
    %204 = vmatpush1.msra.mxu0 0.0
    %205 = vmatprep.subr.mxu0 0.0
    %206 = vmatpush1.msra.mxu0 0.0
    %207 = vmatprep.subr.mxu0 0.0
    %208 = vmatpush1.msra.mxu0 0.0
    %209 = vmatprep.subr.mxu0 0.0
    %210 = vmatpush1.msra.mxu0 0.0
    %211 = vmatprep.subr.mxu0 0.0
    %212 = vmatpush1.msra.mxu0 0.0
    %213 = vmatprep.subr.mxu0 0.0
    %214 = vmatpush1.msra.mxu0 0.0
    %215 = vmatprep.subr.mxu0 0.0
    %216 = vmatpush1.msra.mxu0 0.0
    %217 = vmatprep.subr.mxu0 0.0
    %218 = vmatpush1.msra.mxu0 0.0
    %219 = vmatprep.subr.mxu0 0.0
    %220 = vmatpush1.msra.mxu0 0.0
    %221 = vmatprep.subr.mxu0 0.0
    %222 = vmatpush1.msra.mxu0 0.0
    %223 = vmatprep.subr.mxu0 0.0
    %224 = vmatpush1.msra.mxu0 0.0
    %225 = vmatprep.subr.mxu0 0.0
    %226 = vmatpush1.msra.mxu0 0.0
    %227 = vmatprep.subr.mxu0 0.0
    %228 = vmatpush1.msra.mxu0 0.0
    %229 = vmatprep.mubr.f32.mxu0 0.0
    %230 = vmatmul.mubr.f32.gmra.mrb[0].mxu0 %v160
    %v231 = vpop.f32.mrb[0].mxu0
    %v232 = vadd.f32 %v157, %v231
    %v233 = vpop.f32.mrb[0].mxu0
    %234 = vmatprep.mubr.f32.mxu0 0.0
    %235 = vmatmul.mubr.f32.gmra.mrb[0].mxu0 %v163
    %v236 = vpop.f32.mrb[0].mxu0
    %v237 = vadd.f32 %v157, %v236
    %v238 = vpop.f32.mrb[0].mxu0
    %239 = vdwg.mxu0
    %241 = vrot.lane.b32.xlu0 %v232, 96
    %v242 = vpop.permute.xlu0 %241
    %vm243 = vcmask 64512
    %v244 = vsel %vm243, %v232, 0
    %v246 = vsel %vm243, %v242, 0
    %248 = vmatprep.subr.mxu0 0.0
    %249 = vmatpush1.xpose.msra.mxu0 %v246
    %250 = vmatprep.subr.mxu0 0.0
    %251 = vmatpush1.xpose.msra.mxu0 0.0
    %252 = vmatprep.subr.mxu0 0.0
    %253 = vmatpush1.xpose.msra.mxu0 0.0
    %254 = vmatprep.subr.mxu0 0.0
    %255 = vmatpush1.xpose.msra.mxu0 0.0
    %256 = vmatprep.subr.mxu0 0.0
    %257 = vmatpush1.xpose.msra.mxu0 0.0
    %258 = vmatprep.subr.mxu0 0.0
    %259 = vmatpush1.xpose.msra.mxu0 0.0
    %260 = vmatprep.subr.mxu0 0.0
    %261 = vmatpush1.xpose.msra.mxu0 0.0
    %262 = vmatprep.subr.mxu0 0.0
    %263 = vmatpush1.xpose.msra.mxu0 0.0
    %264 = vmatprep.subr.mxu0 0.0
    %265 = vmatpush1.xpose.msra.mxu0 0.0
    %266 = vmatprep.subr.mxu0 0.0
    %267 = vmatpush1.xpose.msra.mxu0 0.0
    %268 = vmatprep.subr.mxu0 0.0
    %269 = vmatpush1.xpose.msra.mxu0 0.0
    %270 = vmatprep.subr.mxu0 0.0
    %271 = vmatpush1.xpose.msra.mxu0 0.0
    %272 = vmatprep.subr.mxu0 0.0
    %273 = vmatpush1.xpose.msra.mxu0 0.0
    %274 = vmatprep.subr.mxu0 0.0
    %275 = vmatpush1.xpose.msra.mxu0 0.0
    %276 = vmatprep.subr.mxu0 0.0
    %277 = vmatpush1.xpose.msra.mxu0 0.0
    %278 = vmatprep.subr.mxu0 0.0
    %279 = vmatpush1.xpose.msra.mxu0 0.0
    %280 = vmatprep.subr.mxu0 0.0
    %281 = vmatpush1.xpose.msra.mxu0 0.0
    %282 = vmatprep.subr.mxu0 0.0
    %283 = vmatpush1.xpose.msra.mxu0 0.0
    %284 = vmatprep.subr.mxu0 0.0
    %285 = vmatpush1.xpose.msra.mxu0 0.0
    %286 = vmatprep.subr.mxu0 0.0
    %287 = vmatpush1.xpose.msra.mxu0 0.0
    %288 = vmatprep.subr.mxu0 0.0
    %289 = vmatpush1.xpose.msra.mxu0 0.0
    %290 = vmatprep.subr.mxu0 0.0
    %291 = vmatpush1.xpose.msra.mxu0 0.0
    %292 = vmatprep.subr.mxu0 0.0
    %293 = vmatpush1.xpose.msra.mxu0 0.0
    %294 = vmatprep.subr.mxu0 0.0
    %295 = vmatpush1.xpose.msra.mxu0 0.0
    %296 = vmatprep.subr.mxu0 0.0
    %297 = vmatpush1.xpose.msra.mxu0 0.0
    %298 = vmatprep.subr.mxu0 0.0
    %299 = vmatpush1.xpose.msra.mxu0 0.0
    %300 = vmatprep.subr.mxu0 0.0
    %301 = vmatpush1.xpose.msra.mxu0 0.0
    %302 = vmatprep.subr.mxu0 0.0
    %303 = vmatpush1.xpose.msra.mxu0 0.0
    %304 = vmatprep.subr.mxu0 0.0
    %305 = vmatpush1.xpose.msra.mxu0 0.0
    %306 = vmatprep.subr.mxu0 0.0
    %307 = vmatpush1.xpose.msra.mxu0 0.0
    %308 = vmatprep.subr.mxu0 0.0
    %309 = vmatpush1.xpose.msra.mxu0 0.0
    %310 = vmatprep.subr.mxu0 0.0
    %311 = vmatpush1.xpose.msra.mxu0 0.0
    %312 = vmatprep.mubr.f32.mxu0 0.0
    %313 = vmatmul.mubr.f32.gmra.mrb[0].mxu0 %v244
    %v314 = vpop.f32.mrb[0].mxu0
    %v315 = vadd.f32 %v78, %v314
    %v316 = vpop.f32.mrb[0].mxu0
    %317 = vdwg.mxu0
    %v318 = vsel %vm243, %v315, -inf
    %319 = vmax.xlane.f32.xlu0 %v318
    %v320 = vpop.xlane.xlu0 %319
    %v321 = vsub.f32 %v315, %v320
    %v322 = vmul.f32 %v321, 1.442695
    %v323 = vpow.pop %v322
    %v324 = vsel %vm243, %v323, 0.0
    %325 = vadd.xlane.f32.xlu0 %v324
    %v326 = vpop.xlane.xlu0 %325
    %v327 = vrcp.pop %v326
    %v328 = vmul.f32 %v326, %v327
    %v329 = vsub.f32 2.0, %v328
    %v330 = vmul.f32 %v327, %v329
    %v331 = vmul.f32 %v323, %v330
    %332 = vrot.lane.b32.xlu0 %v232, 64
    %v333 = vpop.permute.xlu0 %332
    %v336 = vsel %vm243, %v331, 0
    %338 = vmatprep.subr.mxu0 0.0
    %339 = vmatpush1.msra.mxu0 %v333
    %340 = vmatprep.subr.mxu0 0.0
    %341 = vmatpush1.msra.mxu0 0.0
    %342 = vmatprep.subr.mxu0 0.0
    %343 = vmatpush1.msra.mxu0 0.0
    %344 = vmatprep.subr.mxu0 0.0
    %345 = vmatpush1.msra.mxu0 0.0
    %346 = vmatprep.subr.mxu0 0.0
    %347 = vmatpush1.msra.mxu0 0.0
    %348 = vmatprep.subr.mxu0 0.0
    %349 = vmatpush1.msra.mxu0 0.0
    %350 = vmatprep.subr.mxu0 0.0
    %351 = vmatpush1.msra.mxu0 0.0
    %352 = vmatprep.subr.mxu0 0.0
    %353 = vmatpush1.msra.mxu0 0.0
    %354 = vmatprep.subr.mxu0 0.0
    %355 = vmatpush1.msra.mxu0 0.0
    %356 = vmatprep.subr.mxu0 0.0
    %357 = vmatpush1.msra.mxu0 0.0
    %358 = vmatprep.subr.mxu0 0.0
    %359 = vmatpush1.msra.mxu0 0.0
    %360 = vmatprep.subr.mxu0 0.0
    %361 = vmatpush1.msra.mxu0 0.0
    %362 = vmatprep.subr.mxu0 0.0
    %363 = vmatpush1.msra.mxu0 0.0
    %364 = vmatprep.subr.mxu0 0.0
    %365 = vmatpush1.msra.mxu0 0.0
    %366 = vmatprep.subr.mxu0 0.0
    %367 = vmatpush1.msra.mxu0 0.0
    %368 = vmatprep.subr.mxu0 0.0
    %369 = vmatpush1.msra.mxu0 0.0
    %370 = vmatprep.subr.mxu0 0.0
    %371 = vmatpush1.msra.mxu0 0.0
    %372 = vmatprep.subr.mxu0 0.0
    %373 = vmatpush1.msra.mxu0 0.0
    %374 = vmatprep.subr.mxu0 0.0
    %375 = vmatpush1.msra.mxu0 0.0
    %376 = vmatprep.subr.mxu0 0.0
    %377 = vmatpush1.msra.mxu0 0.0
    %378 = vmatprep.subr.mxu0 0.0
    %379 = vmatpush1.msra.mxu0 0.0
    %380 = vmatprep.subr.mxu0 0.0
    %381 = vmatpush1.msra.mxu0 0.0
    %382 = vmatprep.subr.mxu0 0.0
    %383 = vmatpush1.msra.mxu0 0.0
    %384 = vmatprep.subr.mxu0 0.0
    %385 = vmatpush1.msra.mxu0 0.0
    %386 = vmatprep.subr.mxu0 0.0
    %387 = vmatpush1.msra.mxu0 0.0
    %388 = vmatprep.subr.mxu0 0.0
    %389 = vmatpush1.msra.mxu0 0.0
    %390 = vmatprep.subr.mxu0 0.0
    %391 = vmatpush1.msra.mxu0 0.0
    %392 = vmatprep.subr.mxu0 0.0
    %393 = vmatpush1.msra.mxu0 0.0
    %394 = vmatprep.subr.mxu0 0.0
    %395 = vmatpush1.msra.mxu0 0.0
    %396 = vmatprep.subr.mxu0 0.0
    %397 = vmatpush1.msra.mxu0 0.0
    %398 = vmatprep.subr.mxu0 0.0
    %399 = vmatpush1.msra.mxu0 0.0
    %400 = vmatprep.subr.mxu0 0.0
    %401 = vmatpush1.msra.mxu0 0.0
    %402 = vmatprep.mubr.f32.mxu0 0.0
    %403 = vmatmul.mubr.f32.gmra.mrb[0].mxu0 %v336
    %v404 = vpop.f32.mrb[0].mxu0
    %v405 = vadd.f32 0.0, %v404
    %v406 = vpop.f32.mrb[0].mxu0
    %407 = vdwg.mxu0
    %408 = vst.msk [vmem:[#allocation2] sm:$0xff] %vm243, %v405
    %409 = vrot.lane.b32.xlu0 %v232, 120
    %v410 = vpop.permute.xlu0 %409
    %411 = vrot.lane.b32.xlu0 %v232, 88
    %v412 = vpop.permute.xlu0 %411
    %v413 = vsel %vm243, %v410, 0
    %v415 = vsel %vm243, %v412, 0
    %417 = vmatprep.subr.mxu0 0.0
    %418 = vmatpush1.xpose.msra.mxu0 %v415
    %419 = vmatprep.subr.mxu0 0.0
    %420 = vmatpush1.xpose.msra.mxu0 0.0
    %421 = vmatprep.subr.mxu0 0.0
    %422 = vmatpush1.xpose.msra.mxu0 0.0
    %423 = vmatprep.subr.mxu0 0.0
    %424 = vmatpush1.xpose.msra.mxu0 0.0
    %425 = vmatprep.subr.mxu0 0.0
    %426 = vmatpush1.xpose.msra.mxu0 0.0
    %427 = vmatprep.subr.mxu0 0.0
    %428 = vmatpush1.xpose.msra.mxu0 0.0
    %429 = vmatprep.subr.mxu0 0.0
    %430 = vmatpush1.xpose.msra.mxu0 0.0
    %431 = vmatprep.subr.mxu0 0.0
    %432 = vmatpush1.xpose.msra.mxu0 0.0
    %433 = vmatprep.subr.mxu0 0.0
    %434 = vmatpush1.xpose.msra.mxu0 0.0
    %435 = vmatprep.subr.mxu0 0.0
    %436 = vmatpush1.xpose.msra.mxu0 0.0
    %437 = vmatprep.subr.mxu0 0.0
    %438 = vmatpush1.xpose.msra.mxu0 0.0
    %439 = vmatprep.subr.mxu0 0.0
    %440 = vmatpush1.xpose.msra.mxu0 0.0
    %441 = vmatprep.subr.mxu0 0.0
    %442 = vmatpush1.xpose.msra.mxu0 0.0
    %443 = vmatprep.subr.mxu0 0.0
    %444 = vmatpush1.xpose.msra.mxu0 0.0
    %445 = vmatprep.subr.mxu0 0.0
    %446 = vmatpush1.xpose.msra.mxu0 0.0
    %447 = vmatprep.subr.mxu0 0.0
    %448 = vmatpush1.xpose.msra.mxu0 0.0
    %449 = vmatprep.subr.mxu0 0.0
    %450 = vmatpush1.xpose.msra.mxu0 0.0
    %451 = vmatprep.subr.mxu0 0.0
    %452 = vmatpush1.xpose.msra.mxu0 0.0
    %453 = vmatprep.subr.mxu0 0.0
    %454 = vmatpush1.xpose.msra.mxu0 0.0
    %455 = vmatprep.subr.mxu0 0.0
    %456 = vmatpush1.xpose.msra.mxu0 0.0
    %457 = vmatprep.subr.mxu0 0.0
    %458 = vmatpush1.xpose.msra.mxu0 0.0
    %459 = vmatprep.subr.mxu0 0.0
    %460 = vmatpush1.xpose.msra.mxu0 0.0
    %461 = vmatprep.subr.mxu0 0.0
    %462 = vmatpush1.xpose.msra.mxu0 0.0
    %463 = vmatprep.subr.mxu0 0.0
    %464 = vmatpush1.xpose.msra.mxu0 0.0
    %465 = vmatprep.subr.mxu0 0.0
    %466 = vmatpush1.xpose.msra.mxu0 0.0
    %467 = vmatprep.subr.mxu0 0.0
    %468 = vmatpush1.xpose.msra.mxu0 0.0
    %469 = vmatprep.subr.mxu0 0.0
    %470 = vmatpush1.xpose.msra.mxu0 0.0
    %471 = vmatprep.subr.mxu0 0.0
    %472 = vmatpush1.xpose.msra.mxu0 0.0
    %473 = vmatprep.subr.mxu0 0.0
    %474 = vmatpush1.xpose.msra.mxu0 0.0
    %475 = vmatprep.subr.mxu0 0.0
    %476 = vmatpush1.xpose.msra.mxu0 0.0
    %477 = vmatprep.subr.mxu0 0.0
    %478 = vmatpush1.xpose.msra.mxu0 0.0
    %479 = vmatprep.subr.mxu0 0.0
    %480 = vmatpush1.xpose.msra.mxu0 0.0
    %481 = vmatprep.mubr.f32.mxu0 0.0
    %482 = vmatmul.mubr.f32.gmra.mrb[0].mxu0 %v413
    %v483 = vpop.f32.mrb[0].mxu0
    %v484 = vadd.f32 %v79, %v483
    %v485 = vpop.f32.mrb[0].mxu0
    %486 = vdwg.mxu0
    %v487 = vsel %vm243, %v484, -inf
    %488 = vmax.xlane.f32.xlu0 %v487
    %v489 = vpop.xlane.xlu0 %488
    %v490 = vsub.f32 %v484, %v489
    %v491 = vmul.f32 %v490, 1.442695
    %v492 = vpow.pop %v491
    %v493 = vsel %vm243, %v492, 0.0
    %494 = vadd.xlane.f32.xlu0 %v493
    %v495 = vpop.xlane.xlu0 %494
    %v496 = vrcp.pop %v495
    %v497 = vmul.f32 %v495, %v496
    %v498 = vsub.f32 2.0, %v497
    %v499 = vmul.f32 %v496, %v498
    %v500 = vmul.f32 %v492, %v499
    %501 = vrot.lane.b32.xlu0 %v232, 56
    %v502 = vpop.permute.xlu0 %501
    %v505 = vsel %vm243, %v500, 0
    %507 = vmatprep.subr.mxu0 0.0
    %508 = vmatpush1.msra.mxu0 %v502
    %509 = vmatprep.subr.mxu0 0.0
    %510 = vmatpush1.msra.mxu0 0.0
    %511 = vmatprep.subr.mxu0 0.0
    %512 = vmatpush1.msra.mxu0 0.0
    %513 = vmatprep.subr.mxu0 0.0
    %514 = vmatpush1.msra.mxu0 0.0
    %515 = vmatprep.subr.mxu0 0.0
    %516 = vmatpush1.msra.mxu0 0.0
    %517 = vmatprep.subr.mxu0 0.0
    %518 = vmatpush1.msra.mxu0 0.0
    %519 = vmatprep.subr.mxu0 0.0
    %520 = vmatpush1.msra.mxu0 0.0
    %521 = vmatprep.subr.mxu0 0.0
    %522 = vmatpush1.msra.mxu0 0.0
    %523 = vmatprep.subr.mxu0 0.0
    %524 = vmatpush1.msra.mxu0 0.0
    %525 = vmatprep.subr.mxu0 0.0
    %526 = vmatpush1.msra.mxu0 0.0
    %527 = vmatprep.subr.mxu0 0.0
    %528 = vmatpush1.msra.mxu0 0.0
    %529 = vmatprep.subr.mxu0 0.0
    %530 = vmatpush1.msra.mxu0 0.0
    %531 = vmatprep.subr.mxu0 0.0
    %532 = vmatpush1.msra.mxu0 0.0
    %533 = vmatprep.subr.mxu0 0.0
    %534 = vmatpush1.msra.mxu0 0.0
    %535 = vmatprep.subr.mxu0 0.0
    %536 = vmatpush1.msra.mxu0 0.0
    %537 = vmatprep.subr.mxu0 0.0
    %538 = vmatpush1.msra.mxu0 0.0
    %539 = vmatprep.subr.mxu0 0.0
    %540 = vmatpush1.msra.mxu0 0.0
    %541 = vmatprep.subr.mxu0 0.0
    %542 = vmatpush1.msra.mxu0 0.0
    %543 = vmatprep.subr.mxu0 0.0
    %544 = vmatpush1.msra.mxu0 0.0
    %545 = vmatprep.subr.mxu0 0.0
    %546 = vmatpush1.msra.mxu0 0.0
    %547 = vmatprep.subr.mxu0 0.0
    %548 = vmatpush1.msra.mxu0 0.0
    %549 = vmatprep.subr.mxu0 0.0
    %550 = vmatpush1.msra.mxu0 0.0
    %551 = vmatprep.subr.mxu0 0.0
    %552 = vmatpush1.msra.mxu0 0.0
    %553 = vmatprep.subr.mxu0 0.0
    %554 = vmatpush1.msra.mxu0 0.0
    %555 = vmatprep.subr.mxu0 0.0
    %556 = vmatpush1.msra.mxu0 0.0
    %557 = vmatprep.subr.mxu0 0.0
    %558 = vmatpush1.msra.mxu0 0.0
    %559 = vmatprep.subr.mxu0 0.0
    %560 = vmatpush1.msra.mxu0 0.0
    %561 = vmatprep.subr.mxu0 0.0
    %562 = vmatpush1.msra.mxu0 0.0
    %563 = vmatprep.subr.mxu0 0.0
    %564 = vmatpush1.msra.mxu0 0.0
    %565 = vmatprep.subr.mxu0 0.0
    %566 = vmatpush1.msra.mxu0 0.0
    %567 = vmatprep.subr.mxu0 0.0
    %568 = vmatpush1.msra.mxu0 0.0
    %569 = vmatprep.subr.mxu0 0.0
    %570 = vmatpush1.msra.mxu0 0.0
    %571 = vmatprep.mubr.f32.mxu0 0.0
    %572 = vmatmul.mubr.f32.gmra.mrb[0].mxu0 %v505
    %v573 = vpop.f32.mrb[0].mxu0
    %v574 = vadd.f32 0.0, %v573
    %v575 = vpop.f32.mrb[0].mxu0
    %576 = vdwg.mxu0
    %578 = vrot.lane.b32.xlu0 %v574, 8
    %v579 = vpop.permute.xlu0 %578
    %vm581 = vcmask 130112
    %582 = vst.msk [vmem:[#allocation2] sm:$0xff] %vm581, %v579
    %583 = vrot.lane.b32.xlu0 %v232, 112
    %v584 = vpop.permute.xlu0 %583
    %585 = vrot.lane.b32.xlu0 %v232, 80
    %v586 = vpop.permute.xlu0 %585
    %v587 = vsel %vm243, %v584, 0
    %v589 = vsel %vm243, %v586, 0
    %591 = vmatprep.subr.mxu0 0.0
    %592 = vmatpush1.xpose.msra.mxu0 %v589
    %593 = vmatprep.subr.mxu0 0.0
    %594 = vmatpush1.xpose.msra.mxu0 0.0
    %595 = vmatprep.subr.mxu0 0.0
    %596 = vmatpush1.xpose.msra.mxu0 0.0
    %597 = vmatprep.subr.mxu0 0.0
    %598 = vmatpush1.xpose.msra.mxu0 0.0
    %599 = vmatprep.subr.mxu0 0.0
    %600 = vmatpush1.xpose.msra.mxu0 0.0
    %601 = vmatprep.subr.mxu0 0.0
    %602 = vmatpush1.xpose.msra.mxu0 0.0
    %603 = vmatprep.subr.mxu0 0.0
    %604 = vmatpush1.xpose.msra.mxu0 0.0
    %605 = vmatprep.subr.mxu0 0.0
    %606 = vmatpush1.xpose.msra.mxu0 0.0
    %607 = vmatprep.subr.mxu0 0.0
    %608 = vmatpush1.xpose.msra.mxu0 0.0
    %609 = vmatprep.subr.mxu0 0.0
    %610 = vmatpush1.xpose.msra.mxu0 0.0
    %611 = vmatprep.subr.mxu0 0.0
    %612 = vmatpush1.xpose.msra.mxu0 0.0
    %613 = vmatprep.subr.mxu0 0.0
    %614 = vmatpush1.xpose.msra.mxu0 0.0
    %615 = vmatprep.subr.mxu0 0.0
    %616 = vmatpush1.xpose.msra.mxu0 0.0
    %617 = vmatprep.subr.mxu0 0.0
    %618 = vmatpush1.xpose.msra.mxu0 0.0
    %619 = vmatprep.subr.mxu0 0.0
    %620 = vmatpush1.xpose.msra.mxu0 0.0
    %621 = vmatprep.subr.mxu0 0.0
    %622 = vmatpush1.xpose.msra.mxu0 0.0
    %623 = vmatprep.subr.mxu0 0.0
    %624 = vmatpush1.xpose.msra.mxu0 0.0
    %625 = vmatprep.subr.mxu0 0.0
    %626 = vmatpush1.xpose.msra.mxu0 0.0
    %627 = vmatprep.subr.mxu0 0.0
    %628 = vmatpush1.xpose.msra.mxu0 0.0
    %629 = vmatprep.subr.mxu0 0.0
    %630 = vmatpush1.xpose.msra.mxu0 0.0
    %631 = vmatprep.subr.mxu0 0.0
    %632 = vmatpush1.xpose.msra.mxu0 0.0
    %633 = vmatprep.subr.mxu0 0.0
    %634 = vmatpush1.xpose.msra.mxu0 0.0
    %635 = vmatprep.subr.mxu0 0.0
    %636 = vmatpush1.xpose.msra.mxu0 0.0
    %637 = vmatprep.subr.mxu0 0.0
    %638 = vmatpush1.xpose.msra.mxu0 0.0
    %639 = vmatprep.subr.mxu0 0.0
    %640 = vmatpush1.xpose.msra.mxu0 0.0
    %641 = vmatprep.subr.mxu0 0.0
    %642 = vmatpush1.xpose.msra.mxu0 0.0
    %643 = vmatprep.subr.mxu0 0.0
    %644 = vmatpush1.xpose.msra.mxu0 0.0
    %645 = vmatprep.subr.mxu0 0.0
    %646 = vmatpush1.xpose.msra.mxu0 0.0
    %647 = vmatprep.subr.mxu0 0.0
    %648 = vmatpush1.xpose.msra.mxu0 0.0
    %649 = vmatprep.subr.mxu0 0.0
    %650 = vmatpush1.xpose.msra.mxu0 0.0
    %651 = vmatprep.subr.mxu0 0.0
    %652 = vmatpush1.xpose.msra.mxu0 0.0
    %653 = vmatprep.subr.mxu0 0.0
    %654 = vmatpush1.xpose.msra.mxu0 0.0
    %655 = vmatprep.mubr.f32.mxu0 0.0
    %656 = vmatmul.mubr.f32.gmra.mrb[0].mxu0 %v587
    %v657 = vpop.f32.mrb[0].mxu0
    %v658 = vadd.f32 %v80, %v657
    %v659 = vpop.f32.mrb[0].mxu0
    %660 = vdwg.mxu0
    %v661 = vsel %vm243, %v658, -inf
    %662 = vmax.xlane.f32.xlu0 %v661
    %v663 = vpop.xlane.xlu0 %662
    %v664 = vsub.f32 %v658, %v663
    %v665 = vmul.f32 %v664, 1.442695
    %v666 = vpow.pop %v665
    %v667 = vsel %vm243, %v666, 0.0
    %668 = vadd.xlane.f32.xlu0 %v667
    %v669 = vpop.xlane.xlu0 %668
    %v670 = vrcp.pop %v669
    %v671 = vmul.f32 %v669, %v670
    %v672 = vsub.f32 2.0, %v671
    %v673 = vmul.f32 %v670, %v672
    %v674 = vmul.f32 %v666, %v673
    %675 = vrot.lane.b32.xlu0 %v232, 48
    %v676 = vpop.permute.xlu0 %675
    %v679 = vsel %vm243, %v674, 0
    %681 = vmatprep.subr.mxu0 0.0
    %682 = vmatpush1.msra.mxu0 %v676
    %683 = vmatprep.subr.mxu0 0.0
    %684 = vmatpush1.msra.mxu0 0.0
    %685 = vmatprep.subr.mxu0 0.0
    %686 = vmatpush1.msra.mxu0 0.0
    %687 = vmatprep.subr.mxu0 0.0
    %688 = vmatpush1.msra.mxu0 0.0
    %689 = vmatprep.subr.mxu0 0.0
    %690 = vmatpush1.msra.mxu0 0.0
    %691 = vmatprep.subr.mxu0 0.0
    %692 = vmatpush1.msra.mxu0 0.0
    %693 = vmatprep.subr.mxu0 0.0
    %694 = vmatpush1.msra.mxu0 0.0
    %695 = vmatprep.subr.mxu0 0.0
    %696 = vmatpush1.msra.mxu0 0.0
    %697 = vmatprep.subr.mxu0 0.0
    %698 = vmatpush1.msra.mxu0 0.0
    %699 = vmatprep.subr.mxu0 0.0
    %700 = vmatpush1.msra.mxu0 0.0
    %701 = vmatprep.subr.mxu0 0.0
    %702 = vmatpush1.msra.mxu0 0.0
    %703 = vmatprep.subr.mxu0 0.0
    %704 = vmatpush1.msra.mxu0 0.0
    %705 = vmatprep.subr.mxu0 0.0
    %706 = vmatpush1.msra.mxu0 0.0
    %707 = vmatprep.subr.mxu0 0.0
    %708 = vmatpush1.msra.mxu0 0.0
    %709 = vmatprep.subr.mxu0 0.0
    %710 = vmatpush1.msra.mxu0 0.0
    %711 = vmatprep.subr.mxu0 0.0
    %712 = vmatpush1.msra.mxu0 0.0
    %713 = vmatprep.subr.mxu0 0.0
    %714 = vmatpush1.msra.mxu0 0.0
    %715 = vmatprep.subr.mxu0 0.0
    %716 = vmatpush1.msra.mxu0 0.0
    %717 = vmatprep.subr.mxu0 0.0
    %718 = vmatpush1.msra.mxu0 0.0
    %719 = vmatprep.subr.mxu0 0.0
    %720 = vmatpush1.msra.mxu0 0.0
    %721 = vmatprep.subr.mxu0 0.0
    %722 = vmatpush1.msra.mxu0 0.0
    %723 = vmatprep.subr.mxu0 0.0
    %724 = vmatpush1.msra.mxu0 0.0
    %725 = vmatprep.subr.mxu0 0.0
    %726 = vmatpush1.msra.mxu0 0.0
    %727 = vmatprep.subr.mxu0 0.0
    %728 = vmatpush1.msra.mxu0 0.0
    %729 = vmatprep.subr.mxu0 0.0
    %730 = vmatpush1.msra.mxu0 0.0
    %731 = vmatprep.subr.mxu0 0.0
    %732 = vmatpush1.msra.mxu0 0.0
    %733 = vmatprep.subr.mxu0 0.0
    %734 = vmatpush1.msra.mxu0 0.0
    %735 = vmatprep.subr.mxu0 0.0
    %736 = vmatpush1.msra.mxu0 0.0
    %737 = vmatprep.subr.mxu0 0.0
    %738 = vmatpush1.msra.mxu0 0.0
    %739 = vmatprep.subr.mxu0 0.0
    %740 = vmatpush1.msra.mxu0 0.0
    %741 = vmatprep.subr.mxu0 0.0
    %742 = vmatpush1.msra.mxu0 0.0
    %743 = vmatprep.subr.mxu0 0.0
    %744 = vmatpush1.msra.mxu0 0.0
    %745 = vmatprep.mubr.f32.mxu0 0.0
    %746 = vmatmul.mubr.f32.gmra.mrb[0].mxu0 %v679
    %v747 = vpop.f32.mrb[0].mxu0
    %v748 = vadd.f32 0.0, %v747
    %v749 = vpop.f32.mrb[0].mxu0
    %750 = vdwg.mxu0
    %752 = vrot.lane.b32.xlu0 %v748, 16
    %v753 = vpop.permute.xlu0 %752
    %vm755 = vcmask 195712
    %756 = vst.msk [vmem:[#allocation2] sm:$0xff] %vm755, %v753
    %757 = vrot.lane.b32.xlu0 %v232, 104
    %v758 = vpop.permute.xlu0 %757
    %759 = vrot.lane.b32.xlu0 %v232, 72
    %v760 = vpop.permute.xlu0 %759
    %v761 = vsel %vm243, %v758, 0
    %v763 = vsel %vm243, %v760, 0
    %765 = vmatprep.subr.mxu0 0.0
    %766 = vmatpush1.xpose.msra.mxu0 %v763
    %767 = vmatprep.subr.mxu0 0.0
    %768 = vmatpush1.xpose.msra.mxu0 0.0
    %769 = vmatprep.subr.mxu0 0.0
    %770 = vmatpush1.xpose.msra.mxu0 0.0
    %771 = vmatprep.subr.mxu0 0.0
    %772 = vmatpush1.xpose.msra.mxu0 0.0
    %773 = vmatprep.subr.mxu0 0.0
    %774 = vmatpush1.xpose.msra.mxu0 0.0
    %775 = vmatprep.subr.mxu0 0.0
    %776 = vmatpush1.xpose.msra.mxu0 0.0
    %777 = vmatprep.subr.mxu0 0.0
    %778 = vmatpush1.xpose.msra.mxu0 0.0
    %779 = vmatprep.subr.mxu0 0.0
    %780 = vmatpush1.xpose.msra.mxu0 0.0
    %781 = vmatprep.subr.mxu0 0.0
    %782 = vmatpush1.xpose.msra.mxu0 0.0
    %783 = vmatprep.subr.mxu0 0.0
    %784 = vmatpush1.xpose.msra.mxu0 0.0
    %785 = vmatprep.subr.mxu0 0.0
    %786 = vmatpush1.xpose.msra.mxu0 0.0
    %787 = vmatprep.subr.mxu0 0.0
    %788 = vmatpush1.xpose.msra.mxu0 0.0
    %789 = vmatprep.subr.mxu0 0.0
    %790 = vmatpush1.xpose.msra.mxu0 0.0
    %791 = vmatprep.subr.mxu0 0.0
    %792 = vmatpush1.xpose.msra.mxu0 0.0
    %793 = vmatprep.subr.mxu0 0.0
    %794 = vmatpush1.xpose.msra.mxu0 0.0
    %795 = vmatprep.subr.mxu0 0.0
    %796 = vmatpush1.xpose.msra.mxu0 0.0
    %797 = vmatprep.subr.mxu0 0.0
    %798 = vmatpush1.xpose.msra.mxu0 0.0
    %799 = vmatprep.subr.mxu0 0.0
    %800 = vmatpush1.xpose.msra.mxu0 0.0
    %801 = vmatprep.subr.mxu0 0.0
    %802 = vmatpush1.xpose.msra.mxu0 0.0
    %803 = vmatprep.subr.mxu0 0.0
    %804 = vmatpush1.xpose.msra.mxu0 0.0
    %805 = vmatprep.subr.mxu0 0.0
    %806 = vmatpush1.xpose.msra.mxu0 0.0
    %807 = vmatprep.subr.mxu0 0.0
    %808 = vmatpush1.xpose.msra.mxu0 0.0
    %809 = vmatprep.subr.mxu0 0.0
    %810 = vmatpush1.xpose.msra.mxu0 0.0
    %811 = vmatprep.subr.mxu0 0.0
    %812 = vmatpush1.xpose.msra.mxu0 0.0
    %813 = vmatprep.subr.mxu0 0.0
    %814 = vmatpush1.xpose.msra.mxu0 0.0
    %815 = vmatprep.subr.mxu0 0.0
    %816 = vmatpush1.xpose.msra.mxu0 0.0
    %817 = vmatprep.subr.mxu0 0.0
    %818 = vmatpush1.xpose.msra.mxu0 0.0
    %819 = vmatprep.subr.mxu0 0.0
    %820 = vmatpush1.xpose.msra.mxu0 0.0
    %821 = vmatprep.subr.mxu0 0.0
    %822 = vmatpush1.xpose.msra.mxu0 0.0
    %823 = vmatprep.subr.mxu0 0.0
    %824 = vmatpush1.xpose.msra.mxu0 0.0
    %825 = vmatprep.subr.mxu0 0.0
    %826 = vmatpush1.xpose.msra.mxu0 0.0
    %827 = vmatprep.subr.mxu0 0.0
    %828 = vmatpush1.xpose.msra.mxu0 0.0
    %829 = vmatprep.mubr.f32.mxu0 0.0
    %830 = vmatmul.mubr.f32.gmra.mrb[0].mxu0 %v761
    %v831 = vpop.f32.mrb[0].mxu0
    %v832 = vadd.f32 %v81, %v831
    %v833 = vpop.f32.mrb[0].mxu0
    %834 = vdwg.mxu0
    %v835 = vsel %vm243, %v832, -inf
    %836 = vmax.xlane.f32.xlu0 %v835
    %v837 = vpop.xlane.xlu0 %836
    %v838 = vsub.f32 %v832, %v837
    %v839 = vmul.f32 %v838, 1.442695
    %v840 = vpow.pop %v839
    %v841 = vsel %vm243, %v840, 0.0
    %842 = vadd.xlane.f32.xlu0 %v841
    %v843 = vpop.xlane.xlu0 %842
    %v844 = vrcp.pop %v843
    %v845 = vmul.f32 %v843, %v844
    %v846 = vsub.f32 2.0, %v845
    %v847 = vmul.f32 %v844, %v846
    %v848 = vmul.f32 %v840, %v847
    %849 = vrot.lane.b32.xlu0 %v232, 40
    %v850 = vpop.permute.xlu0 %849
    %v853 = vsel %vm243, %v848, 0
    %855 = vmatprep.subr.mxu0 0.0
    %856 = vmatpush1.msra.mxu0 %v850
    %857 = vmatprep.subr.mxu0 0.0
    %858 = vmatpush1.msra.mxu0 0.0
    %859 = vmatprep.subr.mxu0 0.0
    %860 = vmatpush1.msra.mxu0 0.0
    %861 = vmatprep.subr.mxu0 0.0
    %862 = vmatpush1.msra.mxu0 0.0
    %863 = vmatprep.subr.mxu0 0.0
    %864 = vmatpush1.msra.mxu0 0.0
    %865 = vmatprep.subr.mxu0 0.0
    %866 = vmatpush1.msra.mxu0 0.0
    %867 = vmatprep.subr.mxu0 0.0
    %868 = vmatpush1.msra.mxu0 0.0
    %869 = vmatprep.subr.mxu0 0.0
    %870 = vmatpush1.msra.mxu0 0.0
    %871 = vmatprep.subr.mxu0 0.0
    %872 = vmatpush1.msra.mxu0 0.0
    %873 = vmatprep.subr.mxu0 0.0
    %874 = vmatpush1.msra.mxu0 0.0
    %875 = vmatprep.subr.mxu0 0.0
    %876 = vmatpush1.msra.mxu0 0.0
    %877 = vmatprep.subr.mxu0 0.0
    %878 = vmatpush1.msra.mxu0 0.0
    %879 = vmatprep.subr.mxu0 0.0
    %880 = vmatpush1.msra.mxu0 0.0
    %881 = vmatprep.subr.mxu0 0.0
    %882 = vmatpush1.msra.mxu0 0.0
    %883 = vmatprep.subr.mxu0 0.0
    %884 = vmatpush1.msra.mxu0 0.0
    %885 = vmatprep.subr.mxu0 0.0
    %886 = vmatpush1.msra.mxu0 0.0
    %887 = vmatprep.subr.mxu0 0.0
    %888 = vmatpush1.msra.mxu0 0.0
    %889 = vmatprep.subr.mxu0 0.0
    %890 = vmatpush1.msra.mxu0 0.0
    %891 = vmatprep.subr.mxu0 0.0
    %892 = vmatpush1.msra.mxu0 0.0
    %893 = vmatprep.subr.mxu0 0.0
    %894 = vmatpush1.msra.mxu0 0.0
    %895 = vmatprep.subr.mxu0 0.0
    %896 = vmatpush1.msra.mxu0 0.0
    %897 = vmatprep.subr.mxu0 0.0
    %898 = vmatpush1.msra.mxu0 0.0
    %899 = vmatprep.subr.mxu0 0.0
    %900 = vmatpush1.msra.mxu0 0.0
    %901 = vmatprep.subr.mxu0 0.0
    %902 = vmatpush1.msra.mxu0 0.0
    %903 = vmatprep.subr.mxu0 0.0
    %904 = vmatpush1.msra.mxu0 0.0
    %905 = vmatprep.subr.mxu0 0.0
    %906 = vmatpush1.msra.mxu0 0.0
    %907 = vmatprep.subr.mxu0 0.0
    %908 = vmatpush1.msra.mxu0 0.0
    %909 = vmatprep.subr.mxu0 0.0
    %910 = vmatpush1.msra.mxu0 0.0
    %911 = vmatprep.subr.mxu0 0.0
    %912 = vmatpush1.msra.mxu0 0.0
    %913 = vmatprep.subr.mxu0 0.0
    %914 = vmatpush1.msra.mxu0 0.0
    %915 = vmatprep.subr.mxu0 0.0
    %916 = vmatpush1.msra.mxu0 0.0
    %917 = vmatprep.subr.mxu0 0.0
    %918 = vmatpush1.msra.mxu0 0.0
    %919 = vmatprep.mubr.f32.mxu0 0.0
    %920 = vmatmul.mubr.f32.gmra.mrb[0].mxu0 %v853
    %v921 = vpop.f32.mrb[0].mxu0
    %v922 = vadd.f32 0.0, %v921
    %v923 = vpop.f32.mrb[0].mxu0
    %924 = vdwg.mxu0
    %926 = vrot.lane.b32.xlu0 %v922, 24
    %v927 = vpop.permute.xlu0 %926
    %vm929 = vcmask 261312
    %930 = vst.msk [vmem:[#allocation2] sm:$0xff] %vm929, %v927
    %932 = vrot.lane.b32.xlu0 %v237, 96
    %v933 = vpop.permute.xlu0 %932
    %v934 = vsel %vm243, %v237, 0
    %v936 = vsel %vm243, %v933, 0
    %938 = vmatprep.subr.mxu0 0.0
    %939 = vmatpush1.xpose.msra.mxu0 %v936
    %940 = vmatprep.subr.mxu0 0.0
    %941 = vmatpush1.xpose.msra.mxu0 0.0
    %942 = vmatprep.subr.mxu0 0.0
    %943 = vmatpush1.xpose.msra.mxu0 0.0
    %944 = vmatprep.subr.mxu0 0.0
    %945 = vmatpush1.xpose.msra.mxu0 0.0
    %946 = vmatprep.subr.mxu0 0.0
    %947 = vmatpush1.xpose.msra.mxu0 0.0
    %948 = vmatprep.subr.mxu0 0.0
    %949 = vmatpush1.xpose.msra.mxu0 0.0
    %950 = vmatprep.subr.mxu0 0.0
    %951 = vmatpush1.xpose.msra.mxu0 0.0
    %952 = vmatprep.subr.mxu0 0.0
    %953 = vmatpush1.xpose.msra.mxu0 0.0
    %954 = vmatprep.subr.mxu0 0.0
    %955 = vmatpush1.xpose.msra.mxu0 0.0
    %956 = vmatprep.subr.mxu0 0.0
    %957 = vmatpush1.xpose.msra.mxu0 0.0
    %958 = vmatprep.subr.mxu0 0.0
    %959 = vmatpush1.xpose.msra.mxu0 0.0
    %960 = vmatprep.subr.mxu0 0.0
    %961 = vmatpush1.xpose.msra.mxu0 0.0
    %962 = vmatprep.subr.mxu0 0.0
    %963 = vmatpush1.xpose.msra.mxu0 0.0
    %964 = vmatprep.subr.mxu0 0.0
    %965 = vmatpush1.xpose.msra.mxu0 0.0
    %966 = vmatprep.subr.mxu0 0.0
    %967 = vmatpush1.xpose.msra.mxu0 0.0
    %968 = vmatprep.subr.mxu0 0.0
    %969 = vmatpush1.xpose.msra.mxu0 0.0
    %970 = vmatprep.subr.mxu0 0.0
    %971 = vmatpush1.xpose.msra.mxu0 0.0
    %972 = vmatprep.subr.mxu0 0.0
    %973 = vmatpush1.xpose.msra.mxu0 0.0
    %974 = vmatprep.subr.mxu0 0.0
    %975 = vmatpush1.xpose.msra.mxu0 0.0
    %976 = vmatprep.subr.mxu0 0.0
    %977 = vmatpush1.xpose.msra.mxu0 0.0
    %978 = vmatprep.subr.mxu0 0.0
    %979 = vmatpush1.xpose.msra.mxu0 0.0
    %980 = vmatprep.subr.mxu0 0.0
    %981 = vmatpush1.xpose.msra.mxu0 0.0
    %982 = vmatprep.subr.mxu0 0.0
    %983 = vmatpush1.xpose.msra.mxu0 0.0
    %984 = vmatprep.subr.mxu0 0.0
    %985 = vmatpush1.xpose.msra.mxu0 0.0
    %986 = vmatprep.subr.mxu0 0.0
    %987 = vmatpush1.xpose.msra.mxu0 0.0
    %988 = vmatprep.subr.mxu0 0.0
    %989 = vmatpush1.xpose.msra.mxu0 0.0
    %990 = vmatprep.subr.mxu0 0.0
    %991 = vmatpush1.xpose.msra.mxu0 0.0
    %992 = vmatprep.subr.mxu0 0.0
    %993 = vmatpush1.xpose.msra.mxu0 0.0
    %994 = vmatprep.subr.mxu0 0.0
    %995 = vmatpush1.xpose.msra.mxu0 0.0
    %996 = vmatprep.subr.mxu0 0.0
    %997 = vmatpush1.xpose.msra.mxu0 0.0
    %998 = vmatprep.subr.mxu0 0.0
    %999 = vmatpush1.xpose.msra.mxu0 0.0
    %1000 = vmatprep.subr.mxu0 0.0
    %1001 = vmatpush1.xpose.msra.mxu0 0.0
    %1002 = vmatprep.mubr.f32.mxu0 0.0
    %1003 = vmatmul.mubr.f32.gmra.mrb[0].mxu0 %v934
    %v1004 = vpop.f32.mrb[0].mxu0
    %v1005 = vadd.f32 %v78, %v1004
    %v1006 = vpop.f32.mrb[0].mxu0
    %1007 = vdwg.mxu0
    %v1008 = vsel %vm243, %v1005, -inf
    %1009 = vmax.xlane.f32.xlu0 %v1008
    %v1010 = vpop.xlane.xlu0 %1009
    %v1011 = vsub.f32 %v1005, %v1010
    %v1012 = vmul.f32 %v1011, 1.442695
    %v1013 = vpow.pop %v1012
    %v1014 = vsel %vm243, %v1013, 0.0
    %1015 = vadd.xlane.f32.xlu0 %v1014
    %v1016 = vpop.xlane.xlu0 %1015
    %v1017 = vrcp.pop %v1016
    %v1018 = vmul.f32 %v1016, %v1017
    %v1019 = vsub.f32 2.0, %v1018
    %v1020 = vmul.f32 %v1017, %v1019
    %v1021 = vmul.f32 %v1013, %v1020
    %1022 = vrot.lane.b32.xlu0 %v237, 64
    %v1023 = vpop.permute.xlu0 %1022
    %v1026 = vsel %vm243, %v1021, 0
    %1028 = vmatprep.subr.mxu0 0.0
    %1029 = vmatpush1.msra.mxu0 %v1023
    %1030 = vmatprep.subr.mxu0 0.0
    %1031 = vmatpush1.msra.mxu0 0.0
    %1032 = vmatprep.subr.mxu0 0.0
    %1033 = vmatpush1.msra.mxu0 0.0
    %1034 = vmatprep.subr.mxu0 0.0
    %1035 = vmatpush1.msra.mxu0 0.0
    %1036 = vmatprep.subr.mxu0 0.0
    %1037 = vmatpush1.msra.mxu0 0.0
    %1038 = vmatprep.subr.mxu0 0.0
    %1039 = vmatpush1.msra.mxu0 0.0
    %1040 = vmatprep.subr.mxu0 0.0
    %1041 = vmatpush1.msra.mxu0 0.0
    %1042 = vmatprep.subr.mxu0 0.0
    %1043 = vmatpush1.msra.mxu0 0.0
    %1044 = vmatprep.subr.mxu0 0.0
    %1045 = vmatpush1.msra.mxu0 0.0
    %1046 = vmatprep.subr.mxu0 0.0
    %1047 = vmatpush1.msra.mxu0 0.0
    %1048 = vmatprep.subr.mxu0 0.0
    %1049 = vmatpush1.msra.mxu0 0.0
    %1050 = vmatprep.subr.mxu0 0.0
    %1051 = vmatpush1.msra.mxu0 0.0
    %1052 = vmatprep.subr.mxu0 0.0
    %1053 = vmatpush1.msra.mxu0 0.0
    %1054 = vmatprep.subr.mxu0 0.0
    %1055 = vmatpush1.msra.mxu0 0.0
    %1056 = vmatprep.subr.mxu0 0.0
    %1057 = vmatpush1.msra.mxu0 0.0
    %1058 = vmatprep.subr.mxu0 0.0
    %1059 = vmatpush1.msra.mxu0 0.0
    %1060 = vmatprep.subr.mxu0 0.0
    %1061 = vmatpush1.msra.mxu0 0.0
    %1062 = vmatprep.subr.mxu0 0.0
    %1063 = vmatpush1.msra.mxu0 0.0
    %1064 = vmatprep.subr.mxu0 0.0
    %1065 = vmatpush1.msra.mxu0 0.0
    %1066 = vmatprep.subr.mxu0 0.0
    %1067 = vmatpush1.msra.mxu0 0.0
    %1068 = vmatprep.subr.mxu0 0.0
    %1069 = vmatpush1.msra.mxu0 0.0
    %1070 = vmatprep.subr.mxu0 0.0
    %1071 = vmatpush1.msra.mxu0 0.0
    %1072 = vmatprep.subr.mxu0 0.0
    %1073 = vmatpush1.msra.mxu0 0.0
    %1074 = vmatprep.subr.mxu0 0.0
    %1075 = vmatpush1.msra.mxu0 0.0
    %1076 = vmatprep.subr.mxu0 0.0
    %1077 = vmatpush1.msra.mxu0 0.0
    %1078 = vmatprep.subr.mxu0 0.0
    %1079 = vmatpush1.msra.mxu0 0.0
    %1080 = vmatprep.subr.mxu0 0.0
    %1081 = vmatpush1.msra.mxu0 0.0
    %1082 = vmatprep.subr.mxu0 0.0
    %1083 = vmatpush1.msra.mxu0 0.0
    %1084 = vmatprep.subr.mxu0 0.0
    %1085 = vmatpush1.msra.mxu0 0.0
    %1086 = vmatprep.subr.mxu0 0.0
    %1087 = vmatpush1.msra.mxu0 0.0
    %1088 = vmatprep.subr.mxu0 0.0
    %1089 = vmatpush1.msra.mxu0 0.0
    %1090 = vmatprep.subr.mxu0 0.0
    %1091 = vmatpush1.msra.mxu0 0.0
    %1092 = vmatprep.mubr.f32.mxu0 0.0
    %1093 = vmatmul.mubr.f32.gmra.mrb[0].mxu0 %v1026
    %v1094 = vpop.f32.mrb[0].mxu0
    %v1095 = vadd.f32 0.0, %v1094
    %v1096 = vpop.f32.mrb[0].mxu0
    %1097 = vdwg.mxu0
    %1098 = vst.msk [vmem:[#allocation2 + $0x8] sm:$0xff] %vm243, %v1095
    %1099 = vrot.lane.b32.xlu0 %v237, 120
    %v1100 = vpop.permute.xlu0 %1099
    %1101 = vrot.lane.b32.xlu0 %v237, 88
    %v1102 = vpop.permute.xlu0 %1101
    %v1103 = vsel %vm243, %v1100, 0
    %v1105 = vsel %vm243, %v1102, 0
    %1107 = vmatprep.subr.mxu0 0.0
    %1108 = vmatpush1.xpose.msra.mxu0 %v1105
    %1109 = vmatprep.subr.mxu0 0.0
    %1110 = vmatpush1.xpose.msra.mxu0 0.0
    %1111 = vmatprep.subr.mxu0 0.0
    %1112 = vmatpush1.xpose.msra.mxu0 0.0
    %1113 = vmatprep.subr.mxu0 0.0
    %1114 = vmatpush1.xpose.msra.mxu0 0.0
    %1115 = vmatprep.subr.mxu0 0.0
    %1116 = vmatpush1.xpose.msra.mxu0 0.0
    %1117 = vmatprep.subr.mxu0 0.0
    %1118 = vmatpush1.xpose.msra.mxu0 0.0
    %1119 = vmatprep.subr.mxu0 0.0
    %1120 = vmatpush1.xpose.msra.mxu0 0.0
    %1121 = vmatprep.subr.mxu0 0.0
    %1122 = vmatpush1.xpose.msra.mxu0 0.0
    %1123 = vmatprep.subr.mxu0 0.0
    %1124 = vmatpush1.xpose.msra.mxu0 0.0
    %1125 = vmatprep.subr.mxu0 0.0
    %1126 = vmatpush1.xpose.msra.mxu0 0.0
    %1127 = vmatprep.subr.mxu0 0.0
    %1128 = vmatpush1.xpose.msra.mxu0 0.0
    %1129 = vmatprep.subr.mxu0 0.0
    %1130 = vmatpush1.xpose.msra.mxu0 0.0
    %1131 = vmatprep.subr.mxu0 0.0
    %1132 = vmatpush1.xpose.msra.mxu0 0.0
    %1133 = vmatprep.subr.mxu0 0.0
    %1134 = vmatpush1.xpose.msra.mxu0 0.0
    %1135 = vmatprep.subr.mxu0 0.0
    %1136 = vmatpush1.xpose.msra.mxu0 0.0
    %1137 = vmatprep.subr.mxu0 0.0
    %1138 = vmatpush1.xpose.msra.mxu0 0.0
    %1139 = vmatprep.subr.mxu0 0.0
    %1140 = vmatpush1.xpose.msra.mxu0 0.0
    %1141 = vmatprep.subr.mxu0 0.0
    %1142 = vmatpush1.xpose.msra.mxu0 0.0
    %1143 = vmatprep.subr.mxu0 0.0
    %1144 = vmatpush1.xpose.msra.mxu0 0.0
    %1145 = vmatprep.subr.mxu0 0.0
    %1146 = vmatpush1.xpose.msra.mxu0 0.0
    %1147 = vmatprep.subr.mxu0 0.0
    %1148 = vmatpush1.xpose.msra.mxu0 0.0
    %1149 = vmatprep.subr.mxu0 0.0
    %1150 = vmatpush1.xpose.msra.mxu0 0.0
    %1151 = vmatprep.subr.mxu0 0.0
    %1152 = vmatpush1.xpose.msra.mxu0 0.0
    %1153 = vmatprep.subr.mxu0 0.0
    %1154 = vmatpush1.xpose.msra.mxu0 0.0
    %1155 = vmatprep.subr.mxu0 0.0
    %1156 = vmatpush1.xpose.msra.mxu0 0.0
    %1157 = vmatprep.subr.mxu0 0.0
    %1158 = vmatpush1.xpose.msra.mxu0 0.0
    %1159 = vmatprep.subr.mxu0 0.0
    %1160 = vmatpush1.xpose.msra.mxu0 0.0
    %1161 = vmatprep.subr.mxu0 0.0
    %1162 = vmatpush1.xpose.msra.mxu0 0.0
    %1163 = vmatprep.subr.mxu0 0.0
    %1164 = vmatpush1.xpose.msra.mxu0 0.0
    %1165 = vmatprep.subr.mxu0 0.0
    %1166 = vmatpush1.xpose.msra.mxu0 0.0
    %1167 = vmatprep.subr.mxu0 0.0
    %1168 = vmatpush1.xpose.msra.mxu0 0.0
    %1169 = vmatprep.subr.mxu0 0.0
    %1170 = vmatpush1.xpose.msra.mxu0 0.0
    %1171 = vmatprep.mubr.f32.mxu0 0.0
    %1172 = vmatmul.mubr.f32.gmra.mrb[0].mxu0 %v1103
    %v1173 = vpop.f32.mrb[0].mxu0
    %v1174 = vadd.f32 %v79, %v1173
    %v1175 = vpop.f32.mrb[0].mxu0
    %1176 = vdwg.mxu0
    %v1177 = vsel %vm243, %v1174, -inf
    %1178 = vmax.xlane.f32.xlu0 %v1177
    %v1179 = vpop.xlane.xlu0 %1178
    %v1180 = vsub.f32 %v1174, %v1179
    %v1181 = vmul.f32 %v1180, 1.442695
    %v1182 = vpow.pop %v1181
    %v1183 = vsel %vm243, %v1182, 0.0
    %1184 = vadd.xlane.f32.xlu0 %v1183
    %v1185 = vpop.xlane.xlu0 %1184
    %v1186 = vrcp.pop %v1185
    %v1187 = vmul.f32 %v1185, %v1186
    %v1188 = vsub.f32 2.0, %v1187
    %v1189 = vmul.f32 %v1186, %v1188
    %v1190 = vmul.f32 %v1182, %v1189
    %1191 = vrot.lane.b32.xlu0 %v237, 56
    %v1192 = vpop.permute.xlu0 %1191
    %v1195 = vsel %vm243, %v1190, 0
    %1197 = vmatprep.subr.mxu0 0.0
    %1198 = vmatpush1.msra.mxu0 %v1192
    %1199 = vmatprep.subr.mxu0 0.0
    %1200 = vmatpush1.msra.mxu0 0.0
    %1201 = vmatprep.subr.mxu0 0.0
    %1202 = vmatpush1.msra.mxu0 0.0
    %1203 = vmatprep.subr.mxu0 0.0
    %1204 = vmatpush1.msra.mxu0 0.0
    %1205 = vmatprep.subr.mxu0 0.0
    %1206 = vmatpush1.msra.mxu0 0.0
    %1207 = vmatprep.subr.mxu0 0.0
    %1208 = vmatpush1.msra.mxu0 0.0
    %1209 = vmatprep.subr.mxu0 0.0
    %1210 = vmatpush1.msra.mxu0 0.0
    %1211 = vmatprep.subr.mxu0 0.0
    %1212 = vmatpush1.msra.mxu0 0.0
    %1213 = vmatprep.subr.mxu0 0.0
    %1214 = vmatpush1.msra.mxu0 0.0
    %1215 = vmatprep.subr.mxu0 0.0
    %1216 = vmatpush1.msra.mxu0 0.0
    %1217 = vmatprep.subr.mxu0 0.0
    %1218 = vmatpush1.msra.mxu0 0.0
    %1219 = vmatprep.subr.mxu0 0.0
    %1220 = vmatpush1.msra.mxu0 0.0
    %1221 = vmatprep.subr.mxu0 0.0
    %1222 = vmatpush1.msra.mxu0 0.0
    %1223 = vmatprep.subr.mxu0 0.0
    %1224 = vmatpush1.msra.mxu0 0.0
    %1225 = vmatprep.subr.mxu0 0.0
    %1226 = vmatpush1.msra.mxu0 0.0
    %1227 = vmatprep.subr.mxu0 0.0
    %1228 = vmatpush1.msra.mxu0 0.0
    %1229 = vmatprep.subr.mxu0 0.0
    %1230 = vmatpush1.msra.mxu0 0.0
    %1231 = vmatprep.subr.mxu0 0.0
    %1232 = vmatpush1.msra.mxu0 0.0
    %1233 = vmatprep.subr.mxu0 0.0
    %1234 = vmatpush1.msra.mxu0 0.0
    %1235 = vmatprep.subr.mxu0 0.0
    %1236 = vmatpush1.msra.mxu0 0.0
    %1237 = vmatprep.subr.mxu0 0.0
    %1238 = vmatpush1.msra.mxu0 0.0
    %1239 = vmatprep.subr.mxu0 0.0
    %1240 = vmatpush1.msra.mxu0 0.0
    %1241 = vmatprep.subr.mxu0 0.0
    %1242 = vmatpush1.msra.mxu0 0.0
    %1243 = vmatprep.subr.mxu0 0.0
    %1244 = vmatpush1.msra.mxu0 0.0
    %1245 = vmatprep.subr.mxu0 0.0
    %1246 = vmatpush1.msra.mxu0 0.0
    %1247 = vmatprep.subr.mxu0 0.0
    %1248 = vmatpush1.msra.mxu0 0.0
    %1249 = vmatprep.subr.mxu0 0.0
    %1250 = vmatpush1.msra.mxu0 0.0
    %1251 = vmatprep.subr.mxu0 0.0
    %1252 = vmatpush1.msra.mxu0 0.0
    %1253 = vmatprep.subr.mxu0 0.0
    %1254 = vmatpush1.msra.mxu0 0.0
    %1255 = vmatprep.subr.mxu0 0.0
    %1256 = vmatpush1.msra.mxu0 0.0
    %1257 = vmatprep.subr.mxu0 0.0
    %1258 = vmatpush1.msra.mxu0 0.0
    %1259 = vmatprep.subr.mxu0 0.0
    %1260 = vmatpush1.msra.mxu0 0.0
    %1261 = vmatprep.mubr.f32.mxu0 0.0
    %1262 = vmatmul.mubr.f32.gmra.mrb[0].mxu0 %v1195
    %v1263 = vpop.f32.mrb[0].mxu0
    %v1264 = vadd.f32 0.0, %v1263
    %v1265 = vpop.f32.mrb[0].mxu0
    %1266 = vdwg.mxu0
    %1268 = vrot.lane.b32.xlu0 %v1264, 8
    %v1269 = vpop.permute.xlu0 %1268
    %1271 = vst.msk [vmem:[#allocation2 + $0x8] sm:$0xff] %vm581, %v1269
    %1272 = vrot.lane.b32.xlu0 %v237, 112
    %v1273 = vpop.permute.xlu0 %1272
    %1274 = vrot.lane.b32.xlu0 %v237, 80
    %v1275 = vpop.permute.xlu0 %1274
    %v1276 = vsel %vm243, %v1273, 0
    %v1278 = vsel %vm243, %v1275, 0
    %1280 = vmatprep.subr.mxu0 0.0
    %1281 = vmatpush1.xpose.msra.mxu0 %v1278
    %1282 = vmatprep.subr.mxu0 0.0
    %1283 = vmatpush1.xpose.msra.mxu0 0.0
    %1284 = vmatprep.subr.mxu0 0.0
    %1285 = vmatpush1.xpose.msra.mxu0 0.0
    %1286 = vmatprep.subr.mxu0 0.0
    %1287 = vmatpush1.xpose.msra.mxu0 0.0
    %1288 = vmatprep.subr.mxu0 0.0
    %1289 = vmatpush1.xpose.msra.mxu0 0.0
    %1290 = vmatprep.subr.mxu0 0.0
    %1291 = vmatpush1.xpose.msra.mxu0 0.0
    %1292 = vmatprep.subr.mxu0 0.0
    %1293 = vmatpush1.xpose.msra.mxu0 0.0
    %1294 = vmatprep.subr.mxu0 0.0
    %1295 = vmatpush1.xpose.msra.mxu0 0.0
    %1296 = vmatprep.subr.mxu0 0.0
    %1297 = vmatpush1.xpose.msra.mxu0 0.0
    %1298 = vmatprep.subr.mxu0 0.0
    %1299 = vmatpush1.xpose.msra.mxu0 0.0
    %1300 = vmatprep.subr.mxu0 0.0
    %1301 = vmatpush1.xpose.msra.mxu0 0.0
    %1302 = vmatprep.subr.mxu0 0.0
    %1303 = vmatpush1.xpose.msra.mxu0 0.0
    %1304 = vmatprep.subr.mxu0 0.0
    %1305 = vmatpush1.xpose.msra.mxu0 0.0
    %1306 = vmatprep.subr.mxu0 0.0
    %1307 = vmatpush1.xpose.msra.mxu0 0.0
    %1308 = vmatprep.subr.mxu0 0.0
    %1309 = vmatpush1.xpose.msra.mxu0 0.0
    %1310 = vmatprep.subr.mxu0 0.0
    %1311 = vmatpush1.xpose.msra.mxu0 0.0
    %1312 = vmatprep.subr.mxu0 0.0
    %1313 = vmatpush1.xpose.msra.mxu0 0.0
    %1314 = vmatprep.subr.mxu0 0.0
    %1315 = vmatpush1.xpose.msra.mxu0 0.0
    %1316 = vmatprep.subr.mxu0 0.0
    %1317 = vmatpush1.xpose.msra.mxu0 0.0
    %1318 = vmatprep.subr.mxu0 0.0
    %1319 = vmatpush1.xpose.msra.mxu0 0.0
    %1320 = vmatprep.subr.mxu0 0.0
    %1321 = vmatpush1.xpose.msra.mxu0 0.0
    %1322 = vmatprep.subr.mxu0 0.0
    %1323 = vmatpush1.xpose.msra.mxu0 0.0
    %1324 = vmatprep.subr.mxu0 0.0
    %1325 = vmatpush1.xpose.msra.mxu0 0.0
    %1326 = vmatprep.subr.mxu0 0.0
    %1327 = vmatpush1.xpose.msra.mxu0 0.0
    %1328 = vmatprep.subr.mxu0 0.0
    %1329 = vmatpush1.xpose.msra.mxu0 0.0
    %1330 = vmatprep.subr.mxu0 0.0
    %1331 = vmatpush1.xpose.msra.mxu0 0.0
    %1332 = vmatprep.subr.mxu0 0.0
    %1333 = vmatpush1.xpose.msra.mxu0 0.0
    %1334 = vmatprep.subr.mxu0 0.0
    %1335 = vmatpush1.xpose.msra.mxu0 0.0
    %1336 = vmatprep.subr.mxu0 0.0
    %1337 = vmatpush1.xpose.msra.mxu0 0.0
    %1338 = vmatprep.subr.mxu0 0.0
    %1339 = vmatpush1.xpose.msra.mxu0 0.0
    %1340 = vmatprep.subr.mxu0 0.0
    %1341 = vmatpush1.xpose.msra.mxu0 0.0
    %1342 = vmatprep.subr.mxu0 0.0
    %1343 = vmatpush1.xpose.msra.mxu0 0.0
    %1344 = vmatprep.mubr.f32.mxu0 0.0
    %1345 = vmatmul.mubr.f32.gmra.mrb[0].mxu0 %v1276
    %v1346 = vpop.f32.mrb[0].mxu0
    %v1347 = vadd.f32 %v80, %v1346
    %v1348 = vpop.f32.mrb[0].mxu0
    %1349 = vdwg.mxu0
    %v1350 = vsel %vm243, %v1347, -inf
    %1351 = vmax.xlane.f32.xlu0 %v1350
    %v1352 = vpop.xlane.xlu0 %1351
    %v1353 = vsub.f32 %v1347, %v1352
    %v1354 = vmul.f32 %v1353, 1.442695
    %v1355 = vpow.pop %v1354
    %v1356 = vsel %vm243, %v1355, 0.0
    %1357 = vadd.xlane.f32.xlu0 %v1356
    %v1358 = vpop.xlane.xlu0 %1357
    %v1359 = vrcp.pop %v1358
    %v1360 = vmul.f32 %v1358, %v1359
    %v1361 = vsub.f32 2.0, %v1360
    %v1362 = vmul.f32 %v1359, %v1361
    %v1363 = vmul.f32 %v1355, %v1362
    %1364 = vrot.lane.b32.xlu0 %v237, 48
    %v1365 = vpop.permute.xlu0 %1364
    %v1368 = vsel %vm243, %v1363, 0
    %1370 = vmatprep.subr.mxu0 0.0
    %1371 = vmatpush1.msra.mxu0 %v1365
    %1372 = vmatprep.subr.mxu0 0.0
    %1373 = vmatpush1.msra.mxu0 0.0
    %1374 = vmatprep.subr.mxu0 0.0
    %1375 = vmatpush1.msra.mxu0 0.0
    %1376 = vmatprep.subr.mxu0 0.0
    %1377 = vmatpush1.msra.mxu0 0.0
    %1378 = vmatprep.subr.mxu0 0.0
    %1379 = vmatpush1.msra.mxu0 0.0
    %1380 = vmatprep.subr.mxu0 0.0
    %1381 = vmatpush1.msra.mxu0 0.0
    %1382 = vmatprep.subr.mxu0 0.0
    %1383 = vmatpush1.msra.mxu0 0.0
    %1384 = vmatprep.subr.mxu0 0.0
    %1385 = vmatpush1.msra.mxu0 0.0
    %1386 = vmatprep.subr.mxu0 0.0
    %1387 = vmatpush1.msra.mxu0 0.0
    %1388 = vmatprep.subr.mxu0 0.0
    %1389 = vmatpush1.msra.mxu0 0.0
    %1390 = vmatprep.subr.mxu0 0.0
    %1391 = vmatpush1.msra.mxu0 0.0
    %1392 = vmatprep.subr.mxu0 0.0
    %1393 = vmatpush1.msra.mxu0 0.0
    %1394 = vmatprep.subr.mxu0 0.0
    %1395 = vmatpush1.msra.mxu0 0.0
    %1396 = vmatprep.subr.mxu0 0.0
    %1397 = vmatpush1.msra.mxu0 0.0
    %1398 = vmatprep.subr.mxu0 0.0
    %1399 = vmatpush1.msra.mxu0 0.0
    %1400 = vmatprep.subr.mxu0 0.0
    %1401 = vmatpush1.msra.mxu0 0.0
    %1402 = vmatprep.subr.mxu0 0.0
    %1403 = vmatpush1.msra.mxu0 0.0
    %1404 = vmatprep.subr.mxu0 0.0
    %1405 = vmatpush1.msra.mxu0 0.0
    %1406 = vmatprep.subr.mxu0 0.0
    %1407 = vmatpush1.msra.mxu0 0.0
    %1408 = vmatprep.subr.mxu0 0.0
    %1409 = vmatpush1.msra.mxu0 0.0
    %1410 = vmatprep.subr.mxu0 0.0
    %1411 = vmatpush1.msra.mxu0 0.0
    %1412 = vmatprep.subr.mxu0 0.0
    %1413 = vmatpush1.msra.mxu0 0.0
    %1414 = vmatprep.subr.mxu0 0.0
    %1415 = vmatpush1.msra.mxu0 0.0
    %1416 = vmatprep.subr.mxu0 0.0
    %1417 = vmatpush1.msra.mxu0 0.0
    %1418 = vmatprep.subr.mxu0 0.0
    %1419 = vmatpush1.msra.mxu0 0.0
    %1420 = vmatprep.subr.mxu0 0.0
    %1421 = vmatpush1.msra.mxu0 0.0
    %1422 = vmatprep.subr.mxu0 0.0
    %1423 = vmatpush1.msra.mxu0 0.0
    %1424 = vmatprep.subr.mxu0 0.0
    %1425 = vmatpush1.msra.mxu0 0.0
    %1426 = vmatprep.subr.mxu0 0.0
    %1427 = vmatpush1.msra.mxu0 0.0
    %1428 = vmatprep.subr.mxu0 0.0
    %1429 = vmatpush1.msra.mxu0 0.0
    %1430 = vmatprep.subr.mxu0 0.0
    %1431 = vmatpush1.msra.mxu0 0.0
    %1432 = vmatprep.subr.mxu0 0.0
    %1433 = vmatpush1.msra.mxu0 0.0
    %1434 = vmatprep.mubr.f32.mxu0 0.0
    %1435 = vmatmul.mubr.f32.gmra.mrb[0].mxu0 %v1368
    %v1436 = vpop.f32.mrb[0].mxu0
    %v1437 = vadd.f32 0.0, %v1436
    %v1438 = vpop.f32.mrb[0].mxu0
    %1439 = vdwg.mxu0
    %1441 = vrot.lane.b32.xlu0 %v1437, 16
    %v1442 = vpop.permute.xlu0 %1441
    %1444 = vst.msk [vmem:[#allocation2 + $0x8] sm:$0xff] %vm755, %v1442
    %1445 = vrot.lane.b32.xlu0 %v237, 104
    %v1446 = vpop.permute.xlu0 %1445
    %1447 = vrot.lane.b32.xlu0 %v237, 72
    %v1448 = vpop.permute.xlu0 %1447
    %v1449 = vsel %vm243, %v1446, 0
    %v1451 = vsel %vm243, %v1448, 0
    %1453 = vmatprep.subr.mxu0 0.0
    %1454 = vmatpush1.xpose.msra.mxu0 %v1451
    %1455 = vmatprep.subr.mxu0 0.0
    %1456 = vmatpush1.xpose.msra.mxu0 0.0
    %1457 = vmatprep.subr.mxu0 0.0
    %1458 = vmatpush1.xpose.msra.mxu0 0.0
    %1459 = vmatprep.subr.mxu0 0.0
    %1460 = vmatpush1.xpose.msra.mxu0 0.0
    %1461 = vmatprep.subr.mxu0 0.0
    %1462 = vmatpush1.xpose.msra.mxu0 0.0
    %1463 = vmatprep.subr.mxu0 0.0
    %1464 = vmatpush1.xpose.msra.mxu0 0.0
    %1465 = vmatprep.subr.mxu0 0.0
    %1466 = vmatpush1.xpose.msra.mxu0 0.0
    %1467 = vmatprep.subr.mxu0 0.0
    %1468 = vmatpush1.xpose.msra.mxu0 0.0
    %1469 = vmatprep.subr.mxu0 0.0
    %1470 = vmatpush1.xpose.msra.mxu0 0.0
    %1471 = vmatprep.subr.mxu0 0.0
    %1472 = vmatpush1.xpose.msra.mxu0 0.0
    %1473 = vmatprep.subr.mxu0 0.0
    %1474 = vmatpush1.xpose.msra.mxu0 0.0
    %1475 = vmatprep.subr.mxu0 0.0
    %1476 = vmatpush1.xpose.msra.mxu0 0.0
    %1477 = vmatprep.subr.mxu0 0.0
    %1478 = vmatpush1.xpose.msra.mxu0 0.0
    %1479 = vmatprep.subr.mxu0 0.0
    %1480 = vmatpush1.xpose.msra.mxu0 0.0
    %1481 = vmatprep.subr.mxu0 0.0
    %1482 = vmatpush1.xpose.msra.mxu0 0.0
    %1483 = vmatprep.subr.mxu0 0.0
    %1484 = vmatpush1.xpose.msra.mxu0 0.0
    %1485 = vmatprep.subr.mxu0 0.0
    %1486 = vmatpush1.xpose.msra.mxu0 0.0
    %1487 = vmatprep.subr.mxu0 0.0
    %1488 = vmatpush1.xpose.msra.mxu0 0.0
    %1489 = vmatprep.subr.mxu0 0.0
    %1490 = vmatpush1.xpose.msra.mxu0 0.0
    %1491 = vmatprep.subr.mxu0 0.0
    %1492 = vmatpush1.xpose.msra.mxu0 0.0
    %1493 = vmatprep.subr.mxu0 0.0
    %1494 = vmatpush1.xpose.msra.mxu0 0.0
    %1495 = vmatprep.subr.mxu0 0.0
    %1496 = vmatpush1.xpose.msra.mxu0 0.0
    %1497 = vmatprep.subr.mxu0 0.0
    %1498 = vmatpush1.xpose.msra.mxu0 0.0
    %1499 = vmatprep.subr.mxu0 0.0
    %1500 = vmatpush1.xpose.msra.mxu0 0.0
    %1501 = vmatprep.subr.mxu0 0.0
    %1502 = vmatpush1.xpose.msra.mxu0 0.0
    %1503 = vmatprep.subr.mxu0 0.0
    %1504 = vmatpush1.xpose.msra.mxu0 0.0
    %1505 = vmatprep.subr.mxu0 0.0
    %1506 = vmatpush1.xpose.msra.mxu0 0.0
    %1507 = vmatprep.subr.mxu0 0.0
    %1508 = vmatpush1.xpose.msra.mxu0 0.0
    %1509 = vmatprep.subr.mxu0 0.0
    %1510 = vmatpush1.xpose.msra.mxu0 0.0
    %1511 = vmatprep.subr.mxu0 0.0
    %1512 = vmatpush1.xpose.msra.mxu0 0.0
    %1513 = vmatprep.subr.mxu0 0.0
    %1514 = vmatpush1.xpose.msra.mxu0 0.0
    %1515 = vmatprep.subr.mxu0 0.0
    %1516 = vmatpush1.xpose.msra.mxu0 0.0
    %1517 = vmatprep.mubr.f32.mxu0 0.0
    %1518 = vmatmul.mubr.f32.gmra.mrb[0].mxu0 %v1449
    %v1519 = vpop.f32.mrb[0].mxu0
    %v1520 = vadd.f32 %v81, %v1519
    %v1521 = vpop.f32.mrb[0].mxu0
    %1522 = vdwg.mxu0
    %v1523 = vsel %vm243, %v1520, -inf
    %1524 = vmax.xlane.f32.xlu0 %v1523
    %v1525 = vpop.xlane.xlu0 %1524
    %v1526 = vsub.f32 %v1520, %v1525
    %v1527 = vmul.f32 %v1526, 1.442695
    %v1528 = vpow.pop %v1527
    %v1529 = vsel %vm243, %v1528, 0.0
    %1530 = vadd.xlane.f32.xlu0 %v1529
    %v1531 = vpop.xlane.xlu0 %1530
    %v1532 = vrcp.pop %v1531
    %v1533 = vmul.f32 %v1531, %v1532
    %v1534 = vsub.f32 2.0, %v1533
    %v1535 = vmul.f32 %v1532, %v1534
    %v1536 = vmul.f32 %v1528, %v1535
    %1537 = vrot.lane.b32.xlu0 %v237, 40
    %v1538 = vpop.permute.xlu0 %1537
    %v1541 = vsel %vm243, %v1536, 0
    %1543 = vmatprep.subr.mxu0 0.0
    %1544 = vmatpush1.msra.mxu0 %v1538
    %1545 = vmatprep.subr.mxu0 0.0
    %1546 = vmatpush1.msra.mxu0 0.0
    %1547 = vmatprep.subr.mxu0 0.0
    %1548 = vmatpush1.msra.mxu0 0.0
    %1549 = vmatprep.subr.mxu0 0.0
    %1550 = vmatpush1.msra.mxu0 0.0
    %1551 = vmatprep.subr.mxu0 0.0
    %1552 = vmatpush1.msra.mxu0 0.0
    %1553 = vmatprep.subr.mxu0 0.0
    %1554 = vmatpush1.msra.mxu0 0.0
    %1555 = vmatprep.subr.mxu0 0.0
    %1556 = vmatpush1.msra.mxu0 0.0
    %1557 = vmatprep.subr.mxu0 0.0
    %1558 = vmatpush1.msra.mxu0 0.0
    %1559 = vmatprep.subr.mxu0 0.0
    %1560 = vmatpush1.msra.mxu0 0.0
    %1561 = vmatprep.subr.mxu0 0.0
    %1562 = vmatpush1.msra.mxu0 0.0
    %1563 = vmatprep.subr.mxu0 0.0
    %1564 = vmatpush1.msra.mxu0 0.0
    %1565 = vmatprep.subr.mxu0 0.0
    %1566 = vmatpush1.msra.mxu0 0.0
    %1567 = vmatprep.subr.mxu0 0.0
    %1568 = vmatpush1.msra.mxu0 0.0
    %1569 = vmatprep.subr.mxu0 0.0
    %1570 = vmatpush1.msra.mxu0 0.0
    %1571 = vmatprep.subr.mxu0 0.0
    %1572 = vmatpush1.msra.mxu0 0.0
    %1573 = vmatprep.subr.mxu0 0.0
    %1574 = vmatpush1.msra.mxu0 0.0
    %1575 = vmatprep.subr.mxu0 0.0
    %1576 = vmatpush1.msra.mxu0 0.0
    %1577 = vmatprep.subr.mxu0 0.0
    %1578 = vmatpush1.msra.mxu0 0.0
    %1579 = vmatprep.subr.mxu0 0.0
    %1580 = vmatpush1.msra.mxu0 0.0
    %1581 = vmatprep.subr.mxu0 0.0
    %1582 = vmatpush1.msra.mxu0 0.0
    %1583 = vmatprep.subr.mxu0 0.0
    %1584 = vmatpush1.msra.mxu0 0.0
    %1585 = vmatprep.subr.mxu0 0.0
    %1586 = vmatpush1.msra.mxu0 0.0
    %1587 = vmatprep.subr.mxu0 0.0
    %1588 = vmatpush1.msra.mxu0 0.0
    %1589 = vmatprep.subr.mxu0 0.0
    %1590 = vmatpush1.msra.mxu0 0.0
    %1591 = vmatprep.subr.mxu0 0.0
    %1592 = vmatpush1.msra.mxu0 0.0
    %1593 = vmatprep.subr.mxu0 0.0
    %1594 = vmatpush1.msra.mxu0 0.0
    %1595 = vmatprep.subr.mxu0 0.0
    %1596 = vmatpush1.msra.mxu0 0.0
    %1597 = vmatprep.subr.mxu0 0.0
    %1598 = vmatpush1.msra.mxu0 0.0
    %1599 = vmatprep.subr.mxu0 0.0
    %1600 = vmatpush1.msra.mxu0 0.0
    %1601 = vmatprep.subr.mxu0 0.0
    %1602 = vmatpush1.msra.mxu0 0.0
    %1603 = vmatprep.subr.mxu0 0.0
    %1604 = vmatpush1.msra.mxu0 0.0
    %1605 = vmatprep.subr.mxu0 0.0
    %1606 = vmatpush1.msra.mxu0 0.0
    %1607 = vmatprep.mubr.f32.mxu0 0.0
    %1608 = vmatmul.mubr.f32.gmra.mrb[0].mxu0 %v1541
    %v1609 = vpop.f32.mrb[0].mxu0
    %v1610 = vadd.f32 0.0, %v1609
    %v1611 = vpop.f32.mrb[0].mxu0
    %1612 = vdwg.mxu0
    %1614 = vrot.lane.b32.xlu0 %v1610, 24
    %v1615 = vpop.permute.xlu0 %1614
    %1617 = vst.msk [vmem:[#allocation2 + $0x8] sm:$0xff] %vm929, %v1615
    %v1618 = vld [vmem:[#allocation2] sm:$0xff]
    %v1619 = vld [vmem:[#allocation2 + $0x8] sm:$0xff]
    %v1620 = vld [vmem:[%s6] sm:$0xff]
    %v1621 = vld [vmem:[%s6 + $0x8] sm:$0xff]
    %v1622 = vld [vmem:[%s6 + $0x10] sm:$0xff]
    %v1623 = vld [vmem:[%s6 + $0x18] sm:$0xff]
    %v1624 = vld [vmem:[%s7] sm:$0x1]
    %v1626 = vlaneseq
    %v1627 = vshrl.u32 %v1626, 7
    %v1628 = vsub.s32 0, %v1627
    %v1629 = vrot.slane %v1624, %v1628
    %v1632 = vsel %vm84, %v1618, 0
    %v1635 = vsel %vm84, %v1619, 0
    %1637 = vmatprep.subr.mxu0 0.0
    %1638 = vmatpush1.msra.mxu0 %v1620
    %1639 = vmatprep.subr.mxu0 0.0
    %1640 = vmatpush1.msra.mxu0 %v1621
    %1641 = vmatprep.subr.mxu0 0.0
    %1642 = vmatpush1.msra.mxu0 %v1622
    %1643 = vmatprep.subr.mxu0 0.0
    %1644 = vmatpush1.msra.mxu0 %v1623
    %1645 = vmatprep.subr.mxu0 0.0
    %1646 = vmatpush1.msra.mxu0 0.0
    %1647 = vmatprep.subr.mxu0 0.0
    %1648 = vmatpush1.msra.mxu0 0.0
    %1649 = vmatprep.subr.mxu0 0.0
    %1650 = vmatpush1.msra.mxu0 0.0
    %1651 = vmatprep.subr.mxu0 0.0
    %1652 = vmatpush1.msra.mxu0 0.0
    %1653 = vmatprep.subr.mxu0 0.0
    %1654 = vmatpush1.msra.mxu0 0.0
    %1655 = vmatprep.subr.mxu0 0.0
    %1656 = vmatpush1.msra.mxu0 0.0
    %1657 = vmatprep.subr.mxu0 0.0
    %1658 = vmatpush1.msra.mxu0 0.0
    %1659 = vmatprep.subr.mxu0 0.0
    %1660 = vmatpush1.msra.mxu0 0.0
    %1661 = vmatprep.subr.mxu0 0.0
    %1662 = vmatpush1.msra.mxu0 0.0
    %1663 = vmatprep.subr.mxu0 0.0
    %1664 = vmatpush1.msra.mxu0 0.0
    %1665 = vmatprep.subr.mxu0 0.0
    %1666 = vmatpush1.msra.mxu0 0.0
    %1667 = vmatprep.subr.mxu0 0.0
    %1668 = vmatpush1.msra.mxu0 0.0
    %1669 = vmatprep.subr.mxu0 0.0
    %1670 = vmatpush1.msra.mxu0 0.0
    %1671 = vmatprep.subr.mxu0 0.0
    %1672 = vmatpush1.msra.mxu0 0.0
    %1673 = vmatprep.subr.mxu0 0.0
    %1674 = vmatpush1.msra.mxu0 0.0
    %1675 = vmatprep.subr.mxu0 0.0
    %1676 = vmatpush1.msra.mxu0 0.0
    %1677 = vmatprep.subr.mxu0 0.0
    %1678 = vmatpush1.msra.mxu0 0.0
    %1679 = vmatprep.subr.mxu0 0.0
    %1680 = vmatpush1.msra.mxu0 0.0
    %1681 = vmatprep.subr.mxu0 0.0
    %1682 = vmatpush1.msra.mxu0 0.0
    %1683 = vmatprep.subr.mxu0 0.0
    %1684 = vmatpush1.msra.mxu0 0.0
    %1685 = vmatprep.subr.mxu0 0.0
    %1686 = vmatpush1.msra.mxu0 0.0
    %1687 = vmatprep.subr.mxu0 0.0
    %1688 = vmatpush1.msra.mxu0 0.0
    %1689 = vmatprep.subr.mxu0 0.0
    %1690 = vmatpush1.msra.mxu0 0.0
    %1691 = vmatprep.subr.mxu0 0.0
    %1692 = vmatpush1.msra.mxu0 0.0
    %1693 = vmatprep.subr.mxu0 0.0
    %1694 = vmatpush1.msra.mxu0 0.0
    %1695 = vmatprep.subr.mxu0 0.0
    %1696 = vmatpush1.msra.mxu0 0.0
    %1697 = vmatprep.subr.mxu0 0.0
    %1698 = vmatpush1.msra.mxu0 0.0
    %1699 = vmatprep.subr.mxu0 0.0
    %1700 = vmatpush1.msra.mxu0 0.0
    %1701 = vmatprep.mubr.f32.mxu0 0.0
    %1702 = vmatmul.mubr.f32.gmra.mrb[0].mxu0 %v1632
    %v1703 = vpop.f32.mrb[0].mxu0
    %v1704 = vadd.f32 %v1629, %v1703
    %v1705 = vpop.f32.mrb[0].mxu0
    %1706 = vmatprep.mubr.f32.mxu0 0.0
    %1707 = vmatmul.mubr.f32.gmra.mrb[0].mxu0 %v1635
    %v1708 = vpop.f32.mrb[0].mxu0
    %v1709 = vadd.f32 %v1629, %v1708
    %v1710 = vpop.f32.mrb[0].mxu0
    %1711 = vdwg.mxu0
    %v1712 = vadd.f32 %v76, %v1704
    %v1713 = vadd.f32 %v77, %v1709
    %v1714 = vld [vmem:[%s8] sm:$0x1]
    %v1715 = vld [vmem:[%s9] sm:$0x1]
    %v1716 = vsel %vm84, %v1712, 0.0
    %1717 = vadd.xlane.f32.xlu0 %v1716
    %v1718 = vpop.xlane.xlu0 %1717
    %v1719 = vsel %vm84, %v1713, 0.0
    %1720 = vadd.xlane.f32.xlu0 %v1719
    %v1721 = vpop.xlane.xlu0 %1720
    %v1722 = vmul.f32 %v1718, %v91
    %v1723 = vmul.f32 %v1721, %v91
    %v1724 = vsub.f32 %v1712, %v1722
    %v1725 = vsub.f32 %v1713, %v1723
    %v1726 = vmul.f32 %v1724, %v1724
    %v1727 = vmul.f32 %v1725, %v1725
    %v1728 = vsel %vm84, %v1726, 0.0
    %1729 = vadd.xlane.f32.xlu0 %v1728
    %v1730 = vpop.xlane.xlu0 %1729
    %v1731 = vsel %vm84, %v1727, 0.0
    %1732 = vadd.xlane.f32.xlu0 %v1731
    %v1733 = vpop.xlane.xlu0 %1732
    %v1734 = vmul.f32 %v1730, 0.032258064
    %v1735 = vmul.f32 %v1733, 0.032258064
    %v1736 = vrsqrt.pop %v1734
    %v1737 = vmul.f32 %v1734, %v1736
    %vm1738 = vcmp.eq.f32.partialorder %v1734, inf
    %v1739 = vsel %vm1738, %v1734, %v1737
    %vm1740 = vcmp.eq.f32.partialorder %v1734, 0.0
    %v1741 = vand.u32 %v1734, 2147483648
    %v1742 = vsel %vm1740, %v1741, %v1739
    %v1743 = vrsqrt.pop %v1735
    %v1744 = vmul.f32 %v1735, %v1743
    %vm1745 = vcmp.eq.f32.partialorder %v1735, inf
    %v1746 = vsel %vm1745, %v1735, %v1744
    %vm1747 = vcmp.eq.f32.partialorder %v1735, 0.0
    %v1748 = vand.u32 %v1735, 2147483648
    %v1749 = vsel %vm1747, %v1748, %v1746
    %v1750 = vadd.f32 %v1742, 1e-06
    %v1751 = vadd.f32 %v1749, 1e-06
    %v1752 = vrcp.pop %v1750
    %v1753 = vrcp.pop %v1751
    %v1754 = vmul.f32 %v1750, %v1752
    %v1755 = vmul.f32 %v1751, %v1753
    %v1756 = vsub.f32 2.0, %v1754
    %v1757 = vsub.f32 2.0, %v1755
    %v1758 = vmul.f32 %v1752, %v1756
    %v1759 = vmul.f32 %v1753, %v1757
    %v1761 = vlaneseq
    %v1762 = vshrl.u32 %v1761, 7
    %v1763 = vsub.s32 0, %v1762
    %v1764 = vrot.slane %v1714, %v1763
    %v1766 = vmul.f32 %v1764, %v1724
    %v1767 = vmul.f32 %v1764, %v1725
    %v1768 = vmul.f32 %v1766, %v1758
    %v1769 = vmul.f32 %v1767, %v1759
    %v1771 = vlaneseq
    %v1772 = vshrl.u32 %v1771, 7
    %v1773 = vsub.s32 0, %v1772
    %v1774 = vrot.slane %v1715, %v1773
    %v1776 = vadd.f32 %v1768, %v1774
    %v1777 = vadd.f32 %v1769, %v1774
    %v1778 = vld [vmem:[#allocation6] sm:$0xff]
    %v1779 = vld [vmem:[#allocation6 + $0x8] sm:$0xff]
    %v1780 = vld [vmem:[#allocation6 + $0x10] sm:$0xff]
    %v1781 = vld [vmem:[#allocation6 + $0x18] sm:$0xff]
    %v1782 = vld [vmem:[%s11] sm:$0x1]
    %v1784 = vlaneseq
    %v1785 = vshrl.u32 %v1784, 7
    %v1786 = vsub.s32 0, %v1785
    %v1787 = vrot.slane %v1782, %v1786
    %v1790 = vsel %vm84, %v1776, 0
    %v1793 = vsel %vm84, %v1777, 0
    %1795 = vmatprep.subr.mxu0 0.0
    %1796 = vmatpush1.msra.mxu0 %v1778
    %1797 = vmatprep.subr.mxu0 0.0
    %1798 = vmatpush1.msra.mxu0 %v1779
    %1799 = vmatprep.subr.mxu0 0.0
    %1800 = vmatpush1.msra.mxu0 %v1780
    %1801 = vmatprep.subr.mxu0 0.0
    %1802 = vmatpush1.msra.mxu0 %v1781
    %1803 = vmatprep.subr.mxu0 0.0
    %1804 = vmatpush1.msra.mxu0 0.0
    %1805 = vmatprep.subr.mxu0 0.0
    %1806 = vmatpush1.msra.mxu0 0.0
    %1807 = vmatprep.subr.mxu0 0.0
    %1808 = vmatpush1.msra.mxu0 0.0
    %1809 = vmatprep.subr.mxu0 0.0
    %1810 = vmatpush1.msra.mxu0 0.0
    %1811 = vmatprep.subr.mxu0 0.0
    %1812 = vmatpush1.msra.mxu0 0.0
    %1813 = vmatprep.subr.mxu0 0.0
    %1814 = vmatpush1.msra.mxu0 0.0
    %1815 = vmatprep.subr.mxu0 0.0
    %1816 = vmatpush1.msra.mxu0 0.0
    %1817 = vmatprep.subr.mxu0 0.0
    %1818 = vmatpush1.msra.mxu0 0.0
    %1819 = vmatprep.subr.mxu0 0.0
    %1820 = vmatpush1.msra.mxu0 0.0
    %1821 = vmatprep.subr.mxu0 0.0
    %1822 = vmatpush1.msra.mxu0 0.0
    %1823 = vmatprep.subr.mxu0 0.0
    %1824 = vmatpush1.msra.mxu0 0.0
    %1825 = vmatprep.subr.mxu0 0.0
    %1826 = vmatpush1.msra.mxu0 0.0
    %1827 = vmatprep.subr.mxu0 0.0
    %1828 = vmatpush1.msra.mxu0 0.0
    %1829 = vmatprep.subr.mxu0 0.0
    %1830 = vmatpush1.msra.mxu0 0.0
    %1831 = vmatprep.subr.mxu0 0.0
    %1832 = vmatpush1.msra.mxu0 0.0
    %1833 = vmatprep.subr.mxu0 0.0
    %1834 = vmatpush1.msra.mxu0 0.0
    %1835 = vmatprep.subr.mxu0 0.0
    %1836 = vmatpush1.msra.mxu0 0.0
    %1837 = vmatprep.subr.mxu0 0.0
    %1838 = vmatpush1.msra.mxu0 0.0
    %1839 = vmatprep.subr.mxu0 0.0
    %1840 = vmatpush1.msra.mxu0 0.0
    %1841 = vmatprep.subr.mxu0 0.0
    %1842 = vmatpush1.msra.mxu0 0.0
    %1843 = vmatprep.subr.mxu0 0.0
    %1844 = vmatpush1.msra.mxu0 0.0
    %1845 = vmatprep.subr.mxu0 0.0
    %1846 = vmatpush1.msra.mxu0 0.0
    %1847 = vmatprep.subr.mxu0 0.0
    %1848 = vmatpush1.msra.mxu0 0.0
    %1849 = vmatprep.subr.mxu0 0.0
    %1850 = vmatpush1.msra.mxu0 0.0
    %1851 = vmatprep.subr.mxu0 0.0
    %1852 = vmatpush1.msra.mxu0 0.0
    %1853 = vmatprep.subr.mxu0 0.0
    %1854 = vmatpush1.msra.mxu0 0.0
    %1855 = vmatprep.subr.mxu0 0.0
    %1856 = vmatpush1.msra.mxu0 0.0
    %1857 = vmatprep.subr.mxu0 0.0
    %1858 = vmatpush1.msra.mxu0 0.0
    %1859 = vmatprep.mubr.f32.mxu0 0.0
    %1860 = vmatmul.mubr.f32.gmra.mrb[0].mxu0 %v1790
    %v1861 = vpop.f32.mrb[0].mxu0
    %v1862 = vadd.f32 %v1787, %v1861
    %v1863 = vpop.f32.mrb[0].mxu0
    %1864 = vmatprep.mubr.f32.mxu0 0.0
    %1865 = vmatmul.mubr.f32.gmra.mrb[0].mxu0 %v1793
    %v1866 = vpop.f32.mrb[0].mxu0
    %v1867 = vadd.f32 %v1787, %v1866
    %v1868 = vpop.f32.mrb[0].mxu0
    %1869 = vdwg.mxu0
    %v1870 = vmax.f32 %v1862, 0.0
    %v1871 = vmax.f32 %v1867, 0.0
    %v1872 = vld [vmem:[%s12] sm:$0xff]
    %v1873 = vld [vmem:[%s12 + $0x8] sm:$0xff]
    %v1874 = vld [vmem:[%s12 + $0x10] sm:$0xff]
    %v1875 = vld [vmem:[%s12 + $0x18] sm:$0xff]
    %v1876 = vld [vmem:[%s12 + $0x20] sm:$0xff]
    %v1877 = vld [vmem:[%s12 + $0x28] sm:$0xff]
    %v1878 = vld [vmem:[%s12 + $0x30] sm:$0xff]
    %v1879 = vld [vmem:[%s12 + $0x38] sm:$0xff]
    %v1880 = vld [vmem:[%s13] sm:$0x1]
    %v1882 = vlaneseq
    %v1883 = vshrl.u32 %v1882, 7
    %v1884 = vsub.s32 0, %v1883
    %v1885 = vrot.slane %v1880, %v1884
    %vm1887 = vcmask 523264
    %v1889 = vsel %vm1887, %v1870, 0
    %v1892 = vsel %vm1887, %v1871, 0
    %1894 = vmatprep.subr.mxu0 0.0
    %1895 = vmatpush1.msra.mxu0 %v1872
    %1896 = vmatprep.subr.mxu0 0.0
    %1897 = vmatpush1.msra.mxu0 %v1873
    %1898 = vmatprep.subr.mxu0 0.0
    %1899 = vmatpush1.msra.mxu0 %v1874
    %1900 = vmatprep.subr.mxu0 0.0
    %1901 = vmatpush1.msra.mxu0 %v1875
    %1902 = vmatprep.subr.mxu0 0.0
    %1903 = vmatpush1.msra.mxu0 %v1876
    %1904 = vmatprep.subr.mxu0 0.0
    %1905 = vmatpush1.msra.mxu0 %v1877
    %1906 = vmatprep.subr.mxu0 0.0
    %1907 = vmatpush1.msra.mxu0 %v1878
    %1908 = vmatprep.subr.mxu0 0.0
    %1909 = vmatpush1.msra.mxu0 %v1879
    %1910 = vmatprep.subr.mxu0 0.0
    %1911 = vmatpush1.msra.mxu0 0.0
    %1912 = vmatprep.subr.mxu0 0.0
    %1913 = vmatpush1.msra.mxu0 0.0
    %1914 = vmatprep.subr.mxu0 0.0
    %1915 = vmatpush1.msra.mxu0 0.0
    %1916 = vmatprep.subr.mxu0 0.0
    %1917 = vmatpush1.msra.mxu0 0.0
    %1918 = vmatprep.subr.mxu0 0.0
    %1919 = vmatpush1.msra.mxu0 0.0
    %1920 = vmatprep.subr.mxu0 0.0
    %1921 = vmatpush1.msra.mxu0 0.0
    %1922 = vmatprep.subr.mxu0 0.0
    %1923 = vmatpush1.msra.mxu0 0.0
    %1924 = vmatprep.subr.mxu0 0.0
    %1925 = vmatpush1.msra.mxu0 0.0
    %1926 = vmatprep.subr.mxu0 0.0
    %1927 = vmatpush1.msra.mxu0 0.0
    %1928 = vmatprep.subr.mxu0 0.0
    %1929 = vmatpush1.msra.mxu0 0.0
    %1930 = vmatprep.subr.mxu0 0.0
    %1931 = vmatpush1.msra.mxu0 0.0
    %1932 = vmatprep.subr.mxu0 0.0
    %1933 = vmatpush1.msra.mxu0 0.0
    %1934 = vmatprep.subr.mxu0 0.0
    %1935 = vmatpush1.msra.mxu0 0.0
    %1936 = vmatprep.subr.mxu0 0.0
    %1937 = vmatpush1.msra.mxu0 0.0
    %1938 = vmatprep.subr.mxu0 0.0
    %1939 = vmatpush1.msra.mxu0 0.0
    %1940 = vmatprep.subr.mxu0 0.0
    %1941 = vmatpush1.msra.mxu0 0.0
    %1942 = vmatprep.subr.mxu0 0.0
    %1943 = vmatpush1.msra.mxu0 0.0
    %1944 = vmatprep.subr.mxu0 0.0
    %1945 = vmatpush1.msra.mxu0 0.0
    %1946 = vmatprep.subr.mxu0 0.0
    %1947 = vmatpush1.msra.mxu0 0.0
    %1948 = vmatprep.subr.mxu0 0.0
    %1949 = vmatpush1.msra.mxu0 0.0
    %1950 = vmatprep.subr.mxu0 0.0
    %1951 = vmatpush1.msra.mxu0 0.0
    %1952 = vmatprep.subr.mxu0 0.0
    %1953 = vmatpush1.msra.mxu0 0.0
    %1954 = vmatprep.subr.mxu0 0.0
    %1955 = vmatpush1.msra.mxu0 0.0
    %1956 = vmatprep.subr.mxu0 0.0
    %1957 = vmatpush1.msra.mxu0 0.0
    %1958 = vmatprep.mubr.f32.mxu0 0.0
    %1959 = vmatmul.mubr.f32.gmra.mrb[0].mxu0 %v1889
    %v1960 = vpop.f32.mrb[0].mxu0
    %v1961 = vadd.f32 %v1885, %v1960
    %v1962 = vpop.f32.mrb[0].mxu0
    %1963 = vmatprep.mubr.f32.mxu0 0.0
    %1964 = vmatmul.mubr.f32.gmra.mrb[0].mxu0 %v1892
    %v1965 = vpop.f32.mrb[0].mxu0
    %v1966 = vadd.f32 %v1885, %v1965
    %v1967 = vpop.f32.mrb[0].mxu0
    %1968 = vdwg.mxu0
    %v1969 = vadd.f32 %v1712, %v1961
    %v1970 = vadd.f32 %v1713, %v1966
    %1971 = vst.msk [vmem:[#allocation8] sm:$0xff] %vm84, %v1969
    %1972 = vst.msk [vmem:[#allocation8 + $0x8] sm:$0xff] %vm84, %v1970
    // Predicated region
    $region66: #{tpu_custom_call.1} parent=1 // pred_check
      _
    $region67: #{tpu_custom_call.1} parent=1 // pred_check_branch
      %1974 = sbr.rel (0) target = $region69
    $region68: #{tpu_custom_call.1} parent=1 // pred_region
      %s1976 = ssub.s32 256, 256
      %1977 = vsyncadd [#allocation5], %s1976
      %s1978 = sshll.u32 [#allocation8], 4
      %s1979 = int_to_ptr.vmem [resolvable:$true] %s1978
      %1984 = dma.vmem_to_hbm [thread:$0]  %s1979, 256, %s14, [#allocation5], 128, 128, 8
    $region69: #{tpu_custom_call.1} parent=1 // pred_fallthru
      _
    // Predicated region
    $region70: #{tpu_custom_call.1} parent=1 // pred_check
      _
    $region71: #{tpu_custom_call.1} parent=1 // pred_check_branch
      %1986 = sbr.rel (0) target = $region73
    $region72: #{tpu_custom_call.1} parent=1 // pred_region
      %1987 = dma.done [#allocation5], 256
    $region73: #{tpu_custom_call.1} parent=1 // pred_fallthru
      _
    %1988 = vsyncpa [#allocation4], 1
    %1989 = vsyncpa [#allocation7], 1
    %1990 = vsyncpa [#allocation5], 1

</llo_original>
